<compile_context>
chip_gen: v6e
topology: v6e:2x2x1
jax: 0.10.0
libtpu: 0.0.40
codegen_flags: <defaults>
</compile_context>

<pallas_src>
import functools
import math

import jax
import jax.numpy as jnp
from jax.experimental import pallas as pl
from jax.experimental.pallas import tpu as pltpu


# ----------------------------- fused MHA kernel -----------------------------

def _mha_fused_kernel(q_ref, k_ref, v_ref,
                      wq_ref, bq_ref, wk_ref, bk_ref, wv_ref, bv_ref,
                      wo_ref, bo_ref, o_ref, *, num_heads):
    """One batch element per grid step.

    Blocks:
      q/k/v_ref : (1, S, E)   activations (f32 in HBM, cast to bf16 here)
      wq/wk/wv  : (H, E, D)   bf16, per-head input-projection weights
      bq/bk/bv  : (H, 1, D)   f32 biases (scale already folded into wq/bq)
      wo        : (H, D, E)   bf16, per-head output-projection weights
      bo        : (1, E)      f32
      o_ref     : (1, S, E)
    """
    S = q_ref.shape[1]
    E = q_ref.shape[2]
    H = num_heads

    # Broadcast the (S, E) activation tile across the head batch dim so every
    # projection is a single batched matmul producing (H, S, D) directly —
    # no reshape/transpose/slice of activations anywhere in the kernel.
    xq = jnp.broadcast_to(q_ref[0].astype(jnp.bfloat16), (H, S, E))
    xk = jnp.broadcast_to(k_ref[0].astype(jnp.bfloat16), (H, S, E))
    xv = jnp.broadcast_to(v_ref[0].astype(jnp.bfloat16), (H, S, E))

    proj_dims = (((2,), (1,)), ((0,), (0,)))        # 'hse,hed->hsd'
    qh = jax.lax.dot_general(xq, wq_ref[...], proj_dims,
                             preferred_element_type=jnp.float32) + bq_ref[...]
    kh = jax.lax.dot_general(xk, wk_ref[...], proj_dims,
                             preferred_element_type=jnp.float32) + bk_ref[...]
    vh = jax.lax.dot_general(xv, wv_ref[...], proj_dims,
                             preferred_element_type=jnp.float32) + bv_ref[...]

    # Scaled dot-product attention, all heads at once.  K is never transposed:
    # contract over D ('hqd,hkd->hqk').  1/sqrt(D) is already folded into wq/bq.
    scores = jax.lax.dot_general(
        qh.astype(jnp.bfloat16), kh.astype(jnp.bfloat16),
        (((2,), (2,)), ((0,), (0,))),
        preferred_element_type=jnp.float32)          # (H, S, S) f32

    # Softmax statistics in f32 (v5e has no bf16 VPU/EUP).
    m = jnp.max(scores, axis=-1, keepdims=True)      # (H, S, 1)
    p = jnp.exp(scores - m)                          # (H, S, S) f32
    l = jnp.sum(p, axis=-1, keepdims=True)           # (H, S, 1)

    # P @ V on the MXU with bf16 probabilities ('hqk,hkd->hqd'); normalise
    # afterwards (S*D multiplies instead of S*S) via the EUP reciprocal.
    pv = jax.lax.dot_general(
        p.astype(jnp.bfloat16), vh.astype(jnp.bfloat16),
        (((2,), (1,)), ((0,), (0,))),
        preferred_element_type=jnp.float32)          # (H, S, D)
    attn = pv * pl.reciprocal(l, approx=True)        # (H, S, D) f32

    # Output projection merges heads implicitly:
    #   out[s, e] = sum_h attn[h] @ wo[h]   ('hsd,hde->hse' then sum over h)
    # so there is no head-merge transpose or concat before the store, and the
    # stored tile is lane-dense over the full E.
    out_h = jax.lax.dot_general(
        attn.astype(jnp.bfloat16), wo_ref[...],
        (((2,), (1,)), ((0,), (0,))),
        preferred_element_type=jnp.float32)          # (H, S, E)
    out = jnp.sum(out_h, axis=0) + bo_ref[...]       # (S, E)

    o_ref[0] = out.astype(o_ref.dtype)


# ------------------------- one-time parameter prep ---------------------------

def prepare_mha_params(params, embed_dim, num_heads):
    """Done ONCE (init time): transpose torch-layout weights, split per head,
    fold the 1/sqrt(D) scale into W_q/b_q, and cast weights to bf16."""
    E, H = embed_dim, num_heads
    if E % H != 0:
        raise ValueError(f"embed_dim={E} must be divisible by num_heads={H}")
    D = E // H
    scale = 1.0 / math.sqrt(D)

    def split_w(w, s=1.0):
        # torch Linear weight (out_features, in_features) -> (H, in, D):
        # x @ split_w[h] gives head h's projection with no in-kernel slicing.
        wt = (w.T * s).reshape(E, H, D)                       # (in, H, D)
        return jnp.transpose(wt, (1, 0, 2)).astype(jnp.bfloat16)  # (H, in, D)

    def split_b(b, s=1.0):
        return (b * s).reshape(H, 1, D).astype(jnp.float32)

    return {
        "wq": split_w(params["W_q"], scale), "bq": split_b(params["b_q"], scale),
        "wk": split_w(params["W_k"]),        "bk": split_b(params["b_k"]),
        "wv": split_w(params["W_v"]),        "bv": split_b(params["b_v"]),
        # (E_in, E_out) -> (H, D, E): per-head slab of the output projection.
        "wo": params["W_o"].T.reshape(H, D, E).astype(jnp.bfloat16),
        "bo": params["b_o"].reshape(1, E).astype(jnp.float32),
    }


# --------------------------------- wrapper -----------------------------------

def multi_head_attention(prepared, q, k, v, num_heads):
    """q, k, v: (B, S, E) -> (B, S, E). One fused pallas_call, grid over B."""
    B, S, E = q.shape
    H = num_heads
    assert E % H == 0
    D = E // H

    x_spec = pl.BlockSpec((1, S, E), lambda b: (b, 0, 0))
    wh_spec = pl.BlockSpec((H, E, D), lambda b: (0, 0, 0))
    bh_spec = pl.BlockSpec((H, 1, D), lambda b: (0, 0, 0))
    wo_spec = pl.BlockSpec((H, D, E), lambda b: (0, 0, 0))
    bo_spec = pl.BlockSpec((1, E), lambda b: (0, 0))

    # Advisory cost estimate so XLA can overlap surrounding ops.
    flops = 2 * B * (4 * S * E * E + 2 * H * S * S * D)
    transcendentals = B * H * S * S
    bytes_accessed = 4 * B * S * E * 4 + 4 * E * E * 2 + 4 * E * 4

    kernel = functools.partial(_mha_fused_kernel, num_heads=H)

    return pl.pallas_call(
        kernel,
        out_shape=jax.ShapeDtypeStruct((B, S, E), q.dtype),
        grid=(B,),
        in_specs=[x_spec, x_spec, x_spec,
                  wh_spec, bh_spec, wh_spec, bh_spec, wh_spec, bh_spec,
                  wo_spec, bo_spec],
        out_specs=x_spec,
        compiler_params=pltpu.CompilerParams(
            dimension_semantics=("parallel",)),
        cost_estimate=pl.CostEstimate(
            flops=flops, transcendentals=transcendentals,
            bytes_accessed=bytes_accessed),
    )(q, k, v,
      prepared["wq"], prepared["bq"], prepared["wk"], prepared["bk"],
      prepared["wv"], prepared["bv"], prepared["wo"], prepared["bo"])


# --------------------------------- reference ---------------------------------

def init_params(key, embed_dim):
    bound = 1.0 / math.sqrt(embed_dim)
    keys = jax.random.split(key, 8)

    def u(k, shape):
        return jax.random.uniform(k, shape, jnp.float32, -bound, bound)

    return {
        "W_q": u(keys[0], (embed_dim, embed_dim)), "b_q": u(keys[1], (embed_dim,)),
        "W_k": u(keys[2], (embed_dim, embed_dim)), "b_k": u(keys[3], (embed_dim,)),
        "W_v": u(keys[4], (embed_dim, embed_dim)), "b_v": u(keys[5], (embed_dim,)),
        "W_o": u(keys[6], (embed_dim, embed_dim)), "b_o": u(keys[7], (embed_dim,)),
    }


def reference_mha(params, q, k, v, num_heads):
    """Pure-JAX f32 reference mirroring the PyTorch forward."""
    B, S, E = q.shape
    D = E // num_heads

    def lin(x, w, b):
        return x @ w.T + b

    def split(x):
        return x.reshape(B, S, num_heads, D).transpose(0, 2, 1, 3)

    qh = split(lin(q, params["W_q"], params["b_q"]))
    kh = split(lin(k, params["W_k"], params["b_k"]))
    vh = split(lin(v, params["W_v"], params["b_v"]))
    scores = jnp.einsum("bhqd,bhkd->bhqk", qh, kh) / math.sqrt(D)
    w = jax.nn.softmax(scores, axis=-1)
    attn = jnp.einsum("bhqk,bhkd->bhqd", w, vh)
    merged = attn.transpose(0, 2, 1, 3).reshape(B, S, E)
    return lin(merged, params["W_o"], params["b_o"])


# ----------------------------------- main ------------------------------------

if __name__ == "__main__":
    B, S, E, H = 2, 8, 32, 4
    key = jax.random.PRNGKey(0)
    kq, kk, kv, kp = jax.random.split(key, 4)

    q = jax.random.normal(kq, (B, S, E), jnp.float32)
    k = jax.random.normal(kk, (B, S, E), jnp.float32)
    v = jax.random.normal(kv, (B, S, E), jnp.float32)
    params = init_params(kp, E)

    prepared = prepare_mha_params(params, E, H)   # one-time weight prep

    out = multi_head_attention(prepared, q, k, v, H)
    out = jax.block_until_ready(out)

    ref = reference_mha(params, q, k, v, H)
    assert out.shape == (B, S, E)
    # Tolerance accounts for bf16 MXU operands + the approximate EUP
    # reciprocal in the softmax normalisation (f32 accumulation throughout).
    assert jnp.allclose(out, ref, atol=3e-2, rtol=3e-2), "mismatch vs JAX reference"

    print("KERNEL_OK")
</pallas_src>

<mosaic_0001>
module attributes {stable_mosaic.version = 11 : i64} {
  func.func @_mha_fused_kernel(%arg0: i32, %arg1: memref<1x8x32xf32, #tpu.memory_space<vmem>>, %arg2: memref<1x8x32xf32, #tpu.memory_space<vmem>>, %arg3: memref<1x8x32xf32, #tpu.memory_space<vmem>>, %arg4: memref<4x32x8xbf16, #tpu.memory_space<vmem>>, %arg5: memref<4x1x8xf32, #tpu.memory_space<vmem>>, %arg6: memref<4x32x8xbf16, #tpu.memory_space<vmem>>, %arg7: memref<4x1x8xf32, #tpu.memory_space<vmem>>, %arg8: memref<4x32x8xbf16, #tpu.memory_space<vmem>>, %arg9: memref<4x1x8xf32, #tpu.memory_space<vmem>>, %arg10: memref<4x8x32xbf16, #tpu.memory_space<vmem>>, %arg11: memref<1x32xf32, #tpu.memory_space<vmem>>, %arg12: memref<1x8x32xf32, #tpu.memory_space<vmem>>) attributes {dimension_semantics = [#tpu.dimension_semantics<parallel>], iteration_bounds = array<i64: 2>, scalar_prefetch = 0 : i64, scratch_operands = 0 : i64, tpu.core_type = #tpu.core_type<tc>, window_params = [{transform_indices = @transform_0, window_bounds = array<i64: 1, 8, 32>}, {transform_indices = @transform_1, window_bounds = array<i64: 1, 8, 32>}, {transform_indices = @transform_2, window_bounds = array<i64: 1, 8, 32>}, {pipeline_mode = #tpu.pipeline_mode<synchronous>, transform_indices = @transform_3, window_bounds = array<i64: 4, 32, 8>}, {pipeline_mode = #tpu.pipeline_mode<synchronous>, transform_indices = @transform_4, window_bounds = array<i64: 4, 1, 8>}, {pipeline_mode = #tpu.pipeline_mode<synchronous>, transform_indices = @transform_5, window_bounds = array<i64: 4, 32, 8>}, {pipeline_mode = #tpu.pipeline_mode<synchronous>, transform_indices = @transform_6, window_bounds = array<i64: 4, 1, 8>}, {pipeline_mode = #tpu.pipeline_mode<synchronous>, transform_indices = @transform_7, window_bounds = array<i64: 4, 32, 8>}, {pipeline_mode = #tpu.pipeline_mode<synchronous>, transform_indices = @transform_8, window_bounds = array<i64: 4, 1, 8>}, {pipeline_mode = #tpu.pipeline_mode<synchronous>, transform_indices = @transform_9, window_bounds = array<i64: 4, 8, 32>}, {pipeline_mode = #tpu.pipeline_mode<synchronous>, transform_indices = @transform_10, window_bounds = array<i64: 1, 32>}, {transform_indices = @transform_11, window_bounds = array<i64: 1, 8, 32>}]} {
    %c0 = arith.constant 0 : index
    %c0_0 = arith.constant 0 : index
    %c0_1 = arith.constant 0 : index
    %0 = vector.load %arg1[%c0, %c0_0, %c0_1] : memref<1x8x32xf32, #tpu.memory_space<vmem>>, vector<1x8x32xf32>
    %1 = vector.shape_cast %0 : vector<1x8x32xf32> to vector<8x32xf32>
    %2 = arith.truncf %1 : vector<8x32xf32> to vector<8x32xbf16>
    %3 = vector.shape_cast %2 : vector<8x32xbf16> to vector<1x8x32xbf16>
    %4 = vector.broadcast %3 : vector<1x8x32xbf16> to vector<4x8x32xbf16>
    %c0_2 = arith.constant 0 : index
    %c0_3 = arith.constant 0 : index
    %c0_4 = arith.constant 0 : index
    %5 = vector.load %arg2[%c0_2, %c0_3, %c0_4] : memref<1x8x32xf32, #tpu.memory_space<vmem>>, vector<1x8x32xf32>
    %6 = vector.shape_cast %5 : vector<1x8x32xf32> to vector<8x32xf32>
    %7 = arith.truncf %6 : vector<8x32xf32> to vector<8x32xbf16>
    %8 = vector.shape_cast %7 : vector<8x32xbf16> to vector<1x8x32xbf16>
    %9 = vector.broadcast %8 : vector<1x8x32xbf16> to vector<4x8x32xbf16>
    %c0_5 = arith.constant 0 : index
    %c0_6 = arith.constant 0 : index
    %c0_7 = arith.constant 0 : index
    %10 = vector.load %arg3[%c0_5, %c0_6, %c0_7] : memref<1x8x32xf32, #tpu.memory_space<vmem>>, vector<1x8x32xf32>
    %11 = vector.shape_cast %10 : vector<1x8x32xf32> to vector<8x32xf32>
    %12 = arith.truncf %11 : vector<8x32xf32> to vector<8x32xbf16>
    %13 = vector.shape_cast %12 : vector<8x32xbf16> to vector<1x8x32xbf16>
    %14 = vector.broadcast %13 : vector<1x8x32xbf16> to vector<4x8x32xbf16>
    %c0_8 = arith.constant 0 : index
    %c0_9 = arith.constant 0 : index
    %c0_10 = arith.constant 0 : index
    %15 = vector.load %arg4[%c0_8, %c0_9, %c0_10] : memref<4x32x8xbf16, #tpu.memory_space<vmem>>, vector<4x32x8xbf16>
    %cst = arith.constant dense<0.000000e+00> : vector<4x8x8xf32>
    %16 = tpu.matmul %4, %15, %cst {dimension_numbers = #tpu.dot_dimension_numbers<[2], [1], [1], [2], [0, 0, 0, 1, 1, 2], [0], [0]>} : vector<4x8x32xbf16>, vector<4x32x8xbf16>, vector<4x8x8xf32> -> vector<4x8x8xf32>
    %c0_11 = arith.constant 0 : index
    %c0_12 = arith.constant 0 : index
    %c0_13 = arith.constant 0 : index
    %17 = vector.load %arg5[%c0_11, %c0_12, %c0_13] : memref<4x1x8xf32, #tpu.memory_space<vmem>>, vector<4x1x8xf32>
    %18 = vector.broadcast %17 : vector<4x1x8xf32> to vector<4x8x8xf32>
    %19 = arith.addf %16, %18 : vector<4x8x8xf32>
    %c0_14 = arith.constant 0 : index
    %c0_15 = arith.constant 0 : index
    %c0_16 = arith.constant 0 : index
    %20 = vector.load %arg6[%c0_14, %c0_15, %c0_16] : memref<4x32x8xbf16, #tpu.memory_space<vmem>>, vector<4x32x8xbf16>
    %cst_17 = arith.constant dense<0.000000e+00> : vector<4x8x8xf32>
    %21 = tpu.matmul %9, %20, %cst_17 {dimension_numbers = #tpu.dot_dimension_numbers<[2], [1], [1], [2], [0, 0, 0, 1, 1, 2], [0], [0]>} : vector<4x8x32xbf16>, vector<4x32x8xbf16>, vector<4x8x8xf32> -> vector<4x8x8xf32>
    %c0_18 = arith.constant 0 : index
    %c0_19 = arith.constant 0 : index
    %c0_20 = arith.constant 0 : index
    %22 = vector.load %arg7[%c0_18, %c0_19, %c0_20] : memref<4x1x8xf32, #tpu.memory_space<vmem>>, vector<4x1x8xf32>
    %23 = vector.broadcast %22 : vector<4x1x8xf32> to vector<4x8x8xf32>
    %24 = arith.addf %21, %23 : vector<4x8x8xf32>
    %c0_21 = arith.constant 0 : index
    %c0_22 = arith.constant 0 : index
    %c0_23 = arith.constant 0 : index
    %25 = vector.load %arg8[%c0_21, %c0_22, %c0_23] : memref<4x32x8xbf16, #tpu.memory_space<vmem>>, vector<4x32x8xbf16>
    %cst_24 = arith.constant dense<0.000000e+00> : vector<4x8x8xf32>
    %26 = tpu.matmul %14, %25, %cst_24 {dimension_numbers = #tpu.dot_dimension_numbers<[2], [1], [1], [2], [0, 0, 0, 1, 1, 2], [0], [0]>} : vector<4x8x32xbf16>, vector<4x32x8xbf16>, vector<4x8x8xf32> -> vector<4x8x8xf32>
    %c0_25 = arith.constant 0 : index
    %c0_26 = arith.constant 0 : index
    %c0_27 = arith.constant 0 : index
    %27 = vector.load %arg9[%c0_25, %c0_26, %c0_27] : memref<4x1x8xf32, #tpu.memory_space<vmem>>, vector<4x1x8xf32>
    %28 = vector.broadcast %27 : vector<4x1x8xf32> to vector<4x8x8xf32>
    %29 = arith.addf %26, %28 : vector<4x8x8xf32>
    %30 = arith.truncf %19 : vector<4x8x8xf32> to vector<4x8x8xbf16>
    %31 = arith.truncf %24 : vector<4x8x8xf32> to vector<4x8x8xbf16>
    %cst_28 = arith.constant dense<0.000000e+00> : vector<4x8x8xf32>
    %32 = tpu.matmul %30, %31, %cst_28 {dimension_numbers = #tpu.dot_dimension_numbers<[2], [2], [1], [1], [0, 0, 0, 1, 1, 1], [0], [0]>} : vector<4x8x8xbf16>, vector<4x8x8xbf16>, vector<4x8x8xf32> -> vector<4x8x8xf32>
    %cst_29 = arith.constant dense<0xFF800000> : vector<4x8xf32>
    %33 = vector.multi_reduction <maximumf>, %32, %cst_29 [2] : vector<4x8x8xf32> to vector<4x8xf32>
    %34 = vector.shape_cast %33 : vector<4x8xf32> to vector<4x8x1xf32>
    %35 = vector.broadcast %34 : vector<4x8x1xf32> to vector<4x8x8xf32>
    %36 = arith.subf %32, %35 : vector<4x8x8xf32>
    %37 = math.exp %36 : vector<4x8x8xf32>
    %cst_30 = arith.constant dense<0.000000e+00> : vector<4x8xf32>
    %38 = vector.multi_reduction <add>, %37, %cst_30 [2] : vector<4x8x8xf32> to vector<4x8xf32>
    %39 = vector.shape_cast %38 : vector<4x8xf32> to vector<4x8x1xf32>
    %40 = arith.truncf %37 : vector<4x8x8xf32> to vector<4x8x8xbf16>
    %41 = arith.truncf %29 : vector<4x8x8xf32> to vector<4x8x8xbf16>
    %cst_31 = arith.constant dense<0.000000e+00> : vector<4x8x8xf32>
    %42 = tpu.matmul %40, %41, %cst_31 {dimension_numbers = #tpu.dot_dimension_numbers<[2], [1], [1], [2], [0, 0, 0, 1, 1, 2], [0], [0]>} : vector<4x8x8xbf16>, vector<4x8x8xbf16>, vector<4x8x8xf32> -> vector<4x8x8xf32>
    %43 = tpu.reciprocal %39 {approx = true} : vector<4x8x1xf32> -> vector<4x8x1xf32>
    %44 = vector.broadcast %43 : vector<4x8x1xf32> to vector<4x8x8xf32>
    %45 = arith.mulf %42, %44 : vector<4x8x8xf32>
    %46 = arith.truncf %45 : vector<4x8x8xf32> to vector<4x8x8xbf16>
    %c0_32 = arith.constant 0 : index
    %c0_33 = arith.constant 0 : index
    %c0_34 = arith.constant 0 : index
    %47 = vector.load %arg10[%c0_32, %c0_33, %c0_34] : memref<4x8x32xbf16, #tpu.memory_space<vmem>>, vector<4x8x32xbf16>
    %cst_35 = arith.constant dense<0.000000e+00> : vector<4x8x32xf32>
    %48 = tpu.matmul %46, %47, %cst_35 {dimension_numbers = #tpu.dot_dimension_numbers<[2], [1], [1], [2], [0, 0, 0, 1, 1, 2], [0], [0]>} : vector<4x8x8xbf16>, vector<4x8x32xbf16>, vector<4x8x32xf32> -> vector<4x8x32xf32>
    %cst_36 = arith.constant dense<0.000000e+00> : vector<8x32xf32>
    %49 = vector.multi_reduction <add>, %48, %cst_36 [0] : vector<4x8x32xf32> to vector<8x32xf32>
    %c0_37 = arith.constant 0 : index
    %c0_38 = arith.constant 0 : index
    %50 = vector.load %arg11[%c0_37, %c0_38] : memref<1x32xf32, #tpu.memory_space<vmem>>, vector<1x32xf32>
    %51 = vector.broadcast %50 : vector<1x32xf32> to vector<8x32xf32>
    %52 = arith.addf %49, %51 : vector<8x32xf32>
    %c0_39 = arith.constant 0 : index
    %c0_40 = arith.constant 0 : index
    %c0_41 = arith.constant 0 : index
    %53 = vector.load %arg12[%c0_39, %c0_40, %c0_41] : memref<1x8x32xf32, #tpu.memory_space<vmem>>, vector<1x8x32xf32>
    %54 = vector.shape_cast %53 : vector<1x8x32xf32> to vector<8x32xf32>
    %55 = vector.shape_cast %52 : vector<8x32xf32> to vector<1x8x32xf32>
    tpu.vector_store %arg12[%c0_39, %c0_40, %c0_41], %55 {strides = array<i32>} : memref<1x8x32xf32, #tpu.memory_space<vmem>>, vector<1x8x32xf32>,
    return
  }
  func.func @transform_0(%arg0: i32) -> (i32, i32, i32) {
    %c0_i32 = arith.constant 0 : i32
    %c0_i32_0 = arith.constant 0 : i32
    %c0_i32_1 = arith.constant 0 : i32
    return %arg0, %c0_i32, %c0_i32_0 : i32, i32, i32
  }
  func.func @transform_1(%arg0: i32) -> (i32, i32, i32) {
    %c0_i32 = arith.constant 0 : i32
    %c0_i32_0 = arith.constant 0 : i32
    %c0_i32_1 = arith.constant 0 : i32
    return %arg0, %c0_i32, %c0_i32_0 : i32, i32, i32
  }
  func.func @transform_2(%arg0: i32) -> (i32, i32, i32) {
    %c0_i32 = arith.constant 0 : i32
    %c0_i32_0 = arith.constant 0 : i32
    %c0_i32_1 = arith.constant 0 : i32
    return %arg0, %c0_i32, %c0_i32_0 : i32, i32, i32
  }
  func.func @transform_3(%arg0: i32) -> (i32, i32, i32) {
    %c0_i32 = arith.constant 0 : i32
    %c0_i32_0 = arith.constant 0 : i32
    %c0_i32_1 = arith.constant 0 : i32
    %c0_i32_2 = arith.constant 0 : i32
    return %c0_i32, %c0_i32_0, %c0_i32_1 : i32, i32, i32
  }
  func.func @transform_4(%arg0: i32) -> (i32, i32, i32) {
    %c0_i32 = arith.constant 0 : i32
    %c0_i32_0 = arith.constant 0 : i32
    %c0_i32_1 = arith.constant 0 : i32
    %c0_i32_2 = arith.constant 0 : i32
    return %c0_i32, %c0_i32_0, %c0_i32_1 : i32, i32, i32
  }
  func.func @transform_5(%arg0: i32) -> (i32, i32, i32) {
    %c0_i32 = arith.constant 0 : i32
    %c0_i32_0 = arith.constant 0 : i32
    %c0_i32_1 = arith.constant 0 : i32
    %c0_i32_2 = arith.constant 0 : i32
    return %c0_i32, %c0_i32_0, %c0_i32_1 : i32, i32, i32
  }
  func.func @transform_6(%arg0: i32) -> (i32, i32, i32) {
    %c0_i32 = arith.constant 0 : i32
    %c0_i32_0 = arith.constant 0 : i32
    %c0_i32_1 = arith.constant 0 : i32
    %c0_i32_2 = arith.constant 0 : i32
    return %c0_i32, %c0_i32_0, %c0_i32_1 : i32, i32, i32
  }
  func.func @transform_7(%arg0: i32) -> (i32, i32, i32) {
    %c0_i32 = arith.constant 0 : i32
    %c0_i32_0 = arith.constant 0 : i32
    %c0_i32_1 = arith.constant 0 : i32
    %c0_i32_2 = arith.constant 0 : i32
    return %c0_i32, %c0_i32_0, %c0_i32_1 : i32, i32, i32
  }
  func.func @transform_8(%arg0: i32) -> (i32, i32, i32) {
    %c0_i32 = arith.constant 0 : i32
    %c0_i32_0 = arith.constant 0 : i32
    %c0_i32_1 = arith.constant 0 : i32
    %c0_i32_2 = arith.constant 0 : i32
    return %c0_i32, %c0_i32_0, %c0_i32_1 : i32, i32, i32
  }
  func.func @transform_9(%arg0: i32) -> (i32, i32, i32) {
    %c0_i32 = arith.constant 0 : i32
    %c0_i32_0 = arith.constant 0 : i32
    %c0_i32_1 = arith.constant 0 : i32
    %c0_i32_2 = arith.constant 0 : i32
    return %c0_i32, %c0_i32_0, %c0_i32_1 : i32, i32, i32
  }
  func.func @transform_10(%arg0: i32) -> (i32, i32) {
    %c0_i32 = arith.constant 0 : i32
    %c0_i32_0 = arith.constant 0 : i32
    %c0_i32_1 = arith.constant 0 : i32
    return %c0_i32, %c0_i32_0 : i32, i32
  }
  func.func @transform_11(%arg0: i32) -> (i32, i32, i32) {
    %c0_i32 = arith.constant 0 : i32
    %c0_i32_0 = arith.constant 0 : i32
    %c0_i32_1 = arith.constant 0 : i32
    return %arg0, %c0_i32, %c0_i32_0 : i32, i32, i32
  }
}

</mosaic_0001>

<llo_original>
// kernel: tpu_custom_call.1
$region0: #{tpu_custom_call.1}
  #allocation0 [shape = 'u32[]', space=smem, size = 0x4, offset = 0x4, fixed_abs, tag = 'smem constant byte address 0x4 - core index']
  #allocation1 [shape = 'u32[144,128]{1,0:T(1,128)}', space=vmem, size = 0x12000, scoped, tag = 'internal scratch']
  %s0 = inlined_call_operand.vmem [shape: f32[2,8,32], index: 0, kind: input, shape index: {}]
  %s1 = inlined_call_operand.vmem [shape: f32[2,8,32], index: 1, kind: input, shape index: {}]
  %s2 = inlined_call_operand.vmem [shape: f32[2,8,32], index: 2, kind: input, shape index: {}]
  %s3 = inlined_call_operand.vmem [shape: bf16[4,32,8], index: 3, kind: input, shape index: {}]
  %s4 = inlined_call_operand.vmem [shape: f32[4,1,8], index: 4, kind: input, shape index: {}]
  %s5 = inlined_call_operand.vmem [shape: bf16[4,32,8], index: 5, kind: input, shape index: {}]
  %s6 = inlined_call_operand.vmem [shape: f32[4,1,8], index: 6, kind: input, shape index: {}]
  %s7 = inlined_call_operand.vmem [shape: bf16[4,32,8], index: 7, kind: input, shape index: {}]
  %s8 = inlined_call_operand.vmem [shape: f32[4,1,8], index: 8, kind: input, shape index: {}]
  %s9 = inlined_call_operand.vmem [shape: bf16[4,8,32], index: 9, kind: input, shape index: {}]
  %s10 = inlined_call_operand.vmem [shape: f32[1,32], index: 10, kind: input, shape index: {}]
  %s11 = inlined_call_operand.hbm [shape: f32[2,8,32], index: 11, kind: output, shape index: {}]
  %s12 = sld [smem:[#allocation0]]
  $region77: #{tpu_custom_call.1} parent=0
    _
  %s14 = ssub.s32 1, %s12
  %s15 = scalar_select 0, %s14, %s12
  $region1: #{tpu_custom_call.1} parent=0
    #allocation2 [shape = 'u8[8192]{0}', space=vmem, size = 0x2000, scoped, tag = 'output window, operand 0']
    #allocation3 [shape = 's32[2]{0}', space=sflag, size = 0x8, scoped, tag = 'scoped memory for tpu_custom_call.1']
    %16 = vsyncpa [#allocation3], 0
    %s17 = scalar_lea.sflag [#allocation3], 1
    %18 = vsyncpa %s17, 0
    loop: start=0, step=1, limit=4
    $region2: #{tpu_custom_call.1} parent=1 // loop_pre_header
      _
    $region3: #{tpu_custom_call.1} parent=1 // loop_header
      %s20 = sphi 0, %s24
      %p21 = scmp.ge.s32.totalorder %s20, 4
      %s30 = sphi 0, %s32
      %s33 = sphi 0, %s30
      %s34 = sphi 0, %s33
      %s50 = sphi 0, %s34
      %s56 = sphi 0, %s58
      %s59 = sphi 0, %s56
      %s60 = sphi 0, %s59
      %s76 = sphi 0, %s60
      %s82 = sphi 0, %s84
      %s85 = sphi 0, %s82
      %s86 = sphi 0, %s85
      %s102 = sphi 0, %s86
      %s106 = sphi 0, %s106
      %s108 = sphi 0, %s106
      %s109 = sphi 0, %s108
      %s123 = sphi 0, %s109
      %s127 = sphi 0, %s127
      %s129 = sphi 0, %s127
      %s130 = sphi 0, %s129
      %s144 = sphi 0, %s130
      %s148 = sphi 0, %s148
      %s150 = sphi 0, %s148
      %s151 = sphi 0, %s150
      %s165 = sphi 0, %s151
      %s169 = sphi 0, %s169
      %s171 = sphi 0, %s169
      %s172 = sphi 0, %s171
      %s186 = sphi 0, %s172
      %s190 = sphi 0, %s190
      %s192 = sphi 0, %s190
      %s193 = sphi 0, %s192
      %s207 = sphi 0, %s193
      %s211 = sphi 0, %s211
      %s213 = sphi 0, %s211
      %s214 = sphi 0, %s213
      %s228 = sphi 0, %s214
      %s232 = sphi 0, %s232
      %s234 = sphi 0, %s232
      %s235 = sphi 0, %s234
      %s249 = sphi 0, %s235
      %s253 = sphi 0, %s253
      %s255 = sphi 0, %s253
      %s256 = sphi 0, %s255
      %s270 = sphi 0, %s256
      %s276 = sphi 0, %s278
      %s279 = sphi 0, %s276
      %s280 = sphi 0, %s279
      %s296 = sphi 0, %s280
    $region4: #{tpu_custom_call.1} parent=1 // loop_header_branch
      %23 = sbr.rel (%p21) target = $region8
    $region5: #{tpu_custom_call.1} parent=1 // loop_body
      %s25 = ssub.s32 %s20, 1
      %s26 = ssub.s32 %s20, 2
      %s27 = sadd.s32 %s20, 1
      %s28 = ssub.s32 %s20, %s27
      %p29 = scmp.eq.s32.totalorder %s28, 0
      %s31 = sadd.s32 %s30, 1
      %s32 = scalar_select %p29, %s30, %s31
      %p35 = pneg %p29
      %p36 = scmp.eq.s32.totalorder %s20, 1
      %p37 = por %p35, %p36
      %p38 = scmp.ne.s32.totalorder %s30, %s33
      %p39 = scmp.eq.s32.totalorder %s20, 0
      %p40 = por %p38, %p39
      %p41 = scmp.ne.s32.totalorder %s30, %s33
      %p42 = scmp.eq.s32.totalorder %s25, 1
      %p43 = por %p41, %p42
      %p44 = scmp.ne.s32.totalorder %s33, %s34
      %p45 = scmp.eq.s32.totalorder %s25, 0
      %p46 = por %p44, %p45
      %p47 = scmp.ne.s32.totalorder %s33, %s34
      %p48 = scmp.eq.s32.totalorder %s26, 1
      %p49 = por %p47, %p48
      %p51 = scmp.ne.s32.totalorder %s34, %s50
      %p52 = scmp.eq.s32.totalorder %s26, 0
      %p53 = por %p51, %p52
      %s54 = ssub.s32 %s20, %s27
      %p55 = scmp.eq.s32.totalorder %s54, 0
      %s57 = sadd.s32 %s56, 1
      %s58 = scalar_select %p55, %s56, %s57
      %p61 = pneg %p55
      %p62 = scmp.eq.s32.totalorder %s20, 1
      %p63 = por %p61, %p62
      %p64 = scmp.ne.s32.totalorder %s56, %s59
      %p65 = scmp.eq.s32.totalorder %s20, 0
      %p66 = por %p64, %p65
      %p67 = scmp.ne.s32.totalorder %s56, %s59
      %p68 = scmp.eq.s32.totalorder %s25, 1
      %p69 = por %p67, %p68
      %p70 = scmp.ne.s32.totalorder %s59, %s60
      %p71 = scmp.eq.s32.totalorder %s25, 0
      %p72 = por %p70, %p71
      %p73 = scmp.ne.s32.totalorder %s59, %s60
      %p74 = scmp.eq.s32.totalorder %s26, 1
      %p75 = por %p73, %p74
      %p77 = scmp.ne.s32.totalorder %s60, %s76
      %p78 = scmp.eq.s32.totalorder %s26, 0
      %p79 = por %p77, %p78
      %s80 = ssub.s32 %s20, %s27
      %p81 = scmp.eq.s32.totalorder %s80, 0
      %s83 = sadd.s32 %s82, 1
      %s84 = scalar_select %p81, %s82, %s83
      %p87 = pneg %p81
      %p88 = scmp.eq.s32.totalorder %s20, 1
      %p89 = por %p87, %p88
      %p90 = scmp.ne.s32.totalorder %s82, %s85
      %p91 = scmp.eq.s32.totalorder %s20, 0
      %p92 = por %p90, %p91
      %p93 = scmp.ne.s32.totalorder %s82, %s85
      %p94 = scmp.eq.s32.totalorder %s25, 1
      %p95 = por %p93, %p94
      %p96 = scmp.ne.s32.totalorder %s85, %s86
      %p97 = scmp.eq.s32.totalorder %s25, 0
      %p98 = por %p96, %p97
      %p99 = scmp.ne.s32.totalorder %s85, %s86
      %p100 = scmp.eq.s32.totalorder %s26, 1
      %p101 = por %p99, %p100
      %p103 = scmp.ne.s32.totalorder %s86, %s102
      %p104 = scmp.eq.s32.totalorder %s26, 0
      %p105 = por %p103, %p104
      %s107 = sadd.s32 %s106, 1
      %p110 = scmp.eq.s32.totalorder %s20, 1
      %p111 = scmp.ne.s32.totalorder %s106, %s108
      %p112 = scmp.eq.s32.totalorder %s20, 0
      %p113 = por %p111, %p112
      %p114 = scmp.ne.s32.totalorder %s106, %s108
      %p115 = scmp.eq.s32.totalorder %s25, 1
      %p116 = por %p114, %p115
      %p117 = scmp.ne.s32.totalorder %s108, %s109
      %p118 = scmp.eq.s32.totalorder %s25, 0
      %p119 = por %p117, %p118
      %p120 = scmp.ne.s32.totalorder %s108, %s109
      %p121 = scmp.eq.s32.totalorder %s26, 1
      %p122 = por %p120, %p121
      %p124 = scmp.ne.s32.totalorder %s109, %s123
      %p125 = scmp.eq.s32.totalorder %s26, 0
      %p126 = por %p124, %p125
      %s128 = sadd.s32 %s127, 1
      %p131 = scmp.eq.s32.totalorder %s20, 1
      %p132 = scmp.ne.s32.totalorder %s127, %s129
      %p133 = scmp.eq.s32.totalorder %s20, 0
      %p134 = por %p132, %p133
      %p135 = scmp.ne.s32.totalorder %s127, %s129
      %p136 = scmp.eq.s32.totalorder %s25, 1
      %p137 = por %p135, %p136
      %p138 = scmp.ne.s32.totalorder %s129, %s130
      %p139 = scmp.eq.s32.totalorder %s25, 0
      %p140 = por %p138, %p139
      %p141 = scmp.ne.s32.totalorder %s129, %s130
      %p142 = scmp.eq.s32.totalorder %s26, 1
      %p143 = por %p141, %p142
      %p145 = scmp.ne.s32.totalorder %s130, %s144
      %p146 = scmp.eq.s32.totalorder %s26, 0
      %p147 = por %p145, %p146
      %s149 = sadd.s32 %s148, 1
      %p152 = scmp.eq.s32.totalorder %s20, 1
      %p153 = scmp.ne.s32.totalorder %s148, %s150
      %p154 = scmp.eq.s32.totalorder %s20, 0
      %p155 = por %p153, %p154
      %p156 = scmp.ne.s32.totalorder %s148, %s150
      %p157 = scmp.eq.s32.totalorder %s25, 1
      %p158 = por %p156, %p157
      %p159 = scmp.ne.s32.totalorder %s150, %s151
      %p160 = scmp.eq.s32.totalorder %s25, 0
      %p161 = por %p159, %p160
      %p162 = scmp.ne.s32.totalorder %s150, %s151
      %p163 = scmp.eq.s32.totalorder %s26, 1
      %p164 = por %p162, %p163
      %p166 = scmp.ne.s32.totalorder %s151, %s165
      %p167 = scmp.eq.s32.totalorder %s26, 0
      %p168 = por %p166, %p167
      %s170 = sadd.s32 %s169, 1
      %p173 = scmp.eq.s32.totalorder %s20, 1
      %p174 = scmp.ne.s32.totalorder %s169, %s171
      %p175 = scmp.eq.s32.totalorder %s20, 0
      %p176 = por %p174, %p175
      %p177 = scmp.ne.s32.totalorder %s169, %s171
      %p178 = scmp.eq.s32.totalorder %s25, 1
      %p179 = por %p177, %p178
      %p180 = scmp.ne.s32.totalorder %s171, %s172
      %p181 = scmp.eq.s32.totalorder %s25, 0
      %p182 = por %p180, %p181
      %p183 = scmp.ne.s32.totalorder %s171, %s172
      %p184 = scmp.eq.s32.totalorder %s26, 1
      %p185 = por %p183, %p184
      %p187 = scmp.ne.s32.totalorder %s172, %s186
      %p188 = scmp.eq.s32.totalorder %s26, 0
      %p189 = por %p187, %p188
      %s191 = sadd.s32 %s190, 1
      %p194 = scmp.eq.s32.totalorder %s20, 1
      %p195 = scmp.ne.s32.totalorder %s190, %s192
      %p196 = scmp.eq.s32.totalorder %s20, 0
      %p197 = por %p195, %p196
      %p198 = scmp.ne.s32.totalorder %s190, %s192
      %p199 = scmp.eq.s32.totalorder %s25, 1
      %p200 = por %p198, %p199
      %p201 = scmp.ne.s32.totalorder %s192, %s193
      %p202 = scmp.eq.s32.totalorder %s25, 0
      %p203 = por %p201, %p202
      %p204 = scmp.ne.s32.totalorder %s192, %s193
      %p205 = scmp.eq.s32.totalorder %s26, 1
      %p206 = por %p204, %p205
      %p208 = scmp.ne.s32.totalorder %s193, %s207
      %p209 = scmp.eq.s32.totalorder %s26, 0
      %p210 = por %p208, %p209
      %s212 = sadd.s32 %s211, 1
      %p215 = scmp.eq.s32.totalorder %s20, 1
      %p216 = scmp.ne.s32.totalorder %s211, %s213
      %p217 = scmp.eq.s32.totalorder %s20, 0
      %p218 = por %p216, %p217
      %p219 = scmp.ne.s32.totalorder %s211, %s213
      %p220 = scmp.eq.s32.totalorder %s25, 1
      %p221 = por %p219, %p220
      %p222 = scmp.ne.s32.totalorder %s213, %s214
      %p223 = scmp.eq.s32.totalorder %s25, 0
      %p224 = por %p222, %p223
      %p225 = scmp.ne.s32.totalorder %s213, %s214
      %p226 = scmp.eq.s32.totalorder %s26, 1
      %p227 = por %p225, %p226
      %p229 = scmp.ne.s32.totalorder %s214, %s228
      %p230 = scmp.eq.s32.totalorder %s26, 0
      %p231 = por %p229, %p230
      %s233 = sadd.s32 %s232, 1
      %p236 = scmp.eq.s32.totalorder %s20, 1
      %p237 = scmp.ne.s32.totalorder %s232, %s234
      %p238 = scmp.eq.s32.totalorder %s20, 0
      %p239 = por %p237, %p238
      %p240 = scmp.ne.s32.totalorder %s232, %s234
      %p241 = scmp.eq.s32.totalorder %s25, 1
      %p242 = por %p240, %p241
      %p243 = scmp.ne.s32.totalorder %s234, %s235
      %p244 = scmp.eq.s32.totalorder %s25, 0
      %p245 = por %p243, %p244
      %p246 = scmp.ne.s32.totalorder %s234, %s235
      %p247 = scmp.eq.s32.totalorder %s26, 1
      %p248 = por %p246, %p247
      %p250 = scmp.ne.s32.totalorder %s235, %s249
      %p251 = scmp.eq.s32.totalorder %s26, 0
      %p252 = por %p250, %p251
      %s254 = sadd.s32 %s253, 1
      %p257 = scmp.eq.s32.totalorder %s20, 1
      %p258 = scmp.ne.s32.totalorder %s253, %s255
      %p259 = scmp.eq.s32.totalorder %s20, 0
      %p260 = por %p258, %p259
      %p261 = scmp.ne.s32.totalorder %s253, %s255
      %p262 = scmp.eq.s32.totalorder %s25, 1
      %p263 = por %p261, %p262
      %p264 = scmp.ne.s32.totalorder %s255, %s256
      %p265 = scmp.eq.s32.totalorder %s25, 0
      %p266 = por %p264, %p265
      %p267 = scmp.ne.s32.totalorder %s255, %s256
      %p268 = scmp.eq.s32.totalorder %s26, 1
      %p269 = por %p267, %p268
      %p271 = scmp.ne.s32.totalorder %s256, %s270
      %p272 = scmp.eq.s32.totalorder %s26, 0
      %p273 = por %p271, %p272
      %s274 = ssub.s32 %s20, %s27
      %p275 = scmp.eq.s32.totalorder %s274, 0
      %s277 = sadd.s32 %s276, 1
      %s278 = scalar_select %p275, %s276, %s277
      %p281 = pneg %p275
      %p282 = scmp.eq.s32.totalorder %s20, 1
      %p283 = por %p281, %p282
      %p284 = scmp.ne.s32.totalorder %s276, %s279
      %p285 = scmp.eq.s32.totalorder %s20, 0
      %p286 = por %p284, %p285
      %p287 = scmp.ne.s32.totalorder %s276, %s279
      %p288 = scmp.eq.s32.totalorder %s25, 1
      %p289 = por %p287, %p288
      %p290 = scmp.ne.s32.totalorder %s279, %s280
      %p291 = scmp.eq.s32.totalorder %s25, 0
      %p292 = por %p290, %p291
      %p293 = scmp.ne.s32.totalorder %s279, %s280
      %p294 = scmp.eq.s32.totalorder %s26, 1
      %p295 = por %p293, %p294
      %p297 = scmp.ne.s32.totalorder %s280, %s296
      %p298 = scmp.eq.s32.totalorder %s26, 0
      %p299 = por %p297, %p298
      %p300 = scmp.le.s32.totalorder 1, %s20
      %p301 = scmp.lt.s32.totalorder %s20, 3
      %p302 = pnand %p300, %p301
      %p303 = pneg %p302
      // Predicated region
      $region9: #{tpu_custom_call.1} parent=5 // pred_check
        _
      $region10: #{tpu_custom_call.1} parent=5 // pred_check_branch
        %305 = sbr.rel (%p302) target = $region12
      $region11: #{tpu_custom_call.1} parent=5 // pred_region
        %s306 = ssub.s32 %s20, 1
        // Predicated region
        $region13: #{tpu_custom_call.1} parent=11 // pred_check
          %p307 = pneg %p119
        $region14: #{tpu_custom_call.1} parent=11 // pred_check_branch
          %309 = sbr.rel (%p307) target = $region16
        $region15: #{tpu_custom_call.1} parent=11 // pred_region
          _
        $region16: #{tpu_custom_call.1} parent=11 // pred_fallthru
          _
        // Predicated region
        $region17: #{tpu_custom_call.1} parent=11 // pred_check
          %p310 = pneg %p140
        $region18: #{tpu_custom_call.1} parent=11 // pred_check_branch
          %312 = sbr.rel (%p310) target = $region20
        $region19: #{tpu_custom_call.1} parent=11 // pred_region
          _
        $region20: #{tpu_custom_call.1} parent=11 // pred_fallthru
          _
        // Predicated region
        $region21: #{tpu_custom_call.1} parent=11 // pred_check
          %p313 = pneg %p161
        $region22: #{tpu_custom_call.1} parent=11 // pred_check_branch
          %315 = sbr.rel (%p313) target = $region24
        $region23: #{tpu_custom_call.1} parent=11 // pred_region
          _
        $region24: #{tpu_custom_call.1} parent=11 // pred_fallthru
          _
        // Predicated region
        $region25: #{tpu_custom_call.1} parent=11 // pred_check
          %p316 = pneg %p182
        $region26: #{tpu_custom_call.1} parent=11 // pred_check_branch
          %318 = sbr.rel (%p316) target = $region28
        $region27: #{tpu_custom_call.1} parent=11 // pred_region
          _
        $region28: #{tpu_custom_call.1} parent=11 // pred_fallthru
          _
        // Predicated region
        $region29: #{tpu_custom_call.1} parent=11 // pred_check
          %p319 = pneg %p203
        $region30: #{tpu_custom_call.1} parent=11 // pred_check_branch
          %321 = sbr.rel (%p319) target = $region32
        $region31: #{tpu_custom_call.1} parent=11 // pred_region
          _
        $region32: #{tpu_custom_call.1} parent=11 // pred_fallthru
          _
        // Predicated region
        $region33: #{tpu_custom_call.1} parent=11 // pred_check
          %p322 = pneg %p224
        $region34: #{tpu_custom_call.1} parent=11 // pred_check_branch
          %324 = sbr.rel (%p322) target = $region36
        $region35: #{tpu_custom_call.1} parent=11 // pred_region
          _
        $region36: #{tpu_custom_call.1} parent=11 // pred_fallthru
          _
        // Predicated region
        $region37: #{tpu_custom_call.1} parent=11 // pred_check
          %p325 = pneg %p245
        $region38: #{tpu_custom_call.1} parent=11 // pred_check_branch
          %327 = sbr.rel (%p325) target = $region40
        $region39: #{tpu_custom_call.1} parent=11 // pred_region
          _
        $region40: #{tpu_custom_call.1} parent=11 // pred_fallthru
          _
        // Predicated region
        $region41: #{tpu_custom_call.1} parent=11 // pred_check
          %p328 = pneg %p266
        $region42: #{tpu_custom_call.1} parent=11 // pred_check_branch
          %330 = sbr.rel (%p328) target = $region44
        $region43: #{tpu_custom_call.1} parent=11 // pred_region
          _
        $region44: #{tpu_custom_call.1} parent=11 // pred_fallthru
          _
      $region12: #{tpu_custom_call.1} parent=5 // pred_fallthru
        _
      %p331 = scmp.lt.s32.totalorder %s20, 2
      // Predicated region
      $region45: #{tpu_custom_call.1} parent=5 // pred_check
        %p332 = pneg %p331
      $region46: #{tpu_custom_call.1} parent=5 // pred_check_branch
        %334 = sbr.rel (%p332) target = $region48
      $region47: #{tpu_custom_call.1} parent=5 // pred_region
        // Predicated region
        $region49: #{tpu_custom_call.1} parent=47 // pred_check
          %p335 = pneg %p40
        $region50: #{tpu_custom_call.1} parent=47 // pred_check_branch
          %337 = sbr.rel (%p335) target = $region52
        $region51: #{tpu_custom_call.1} parent=47 // pred_region
          %p338 = scmp.lt.s32.totalorder %s20, 1
          %s339 = scalar_select %p338, %s20, 1
          %s340 = smul.addr %s339, 8
          %s341 = scalar_lea.vmem %s0, %s340
        $region52: #{tpu_custom_call.1} parent=47 // pred_fallthru
          _
        // Predicated region
        $region53: #{tpu_custom_call.1} parent=47 // pred_check
          %p342 = pneg %p66
        $region54: #{tpu_custom_call.1} parent=47 // pred_check_branch
          %344 = sbr.rel (%p342) target = $region56
        $region55: #{tpu_custom_call.1} parent=47 // pred_region
          %p345 = scmp.lt.s32.totalorder %s20, 1
          %s346 = scalar_select %p345, %s20, 1
          %s347 = smul.addr %s346, 8
          %s348 = scalar_lea.vmem %s1, %s347
        $region56: #{tpu_custom_call.1} parent=47 // pred_fallthru
          _
        // Predicated region
        $region57: #{tpu_custom_call.1} parent=47 // pred_check
          %p349 = pneg %p92
        $region58: #{tpu_custom_call.1} parent=47 // pred_check_branch
          %351 = sbr.rel (%p349) target = $region60
        $region59: #{tpu_custom_call.1} parent=47 // pred_region
          %p352 = scmp.lt.s32.totalorder %s20, 1
          %s353 = scalar_select %p352, %s20, 1
          %s354 = smul.addr %s353, 8
          %s355 = scalar_lea.vmem %s2, %s354
        $region60: #{tpu_custom_call.1} parent=47 // pred_fallthru
          _
      $region48: #{tpu_custom_call.1} parent=5 // pred_fallthru
        _
      %p356 = scmp.le.s32.totalorder 1, %s20
      %p357 = scmp.lt.s32.totalorder %s20, 3
      %p358 = pnand %p356, %p357
      %p359 = pneg %p358
      // Predicated region
      $region61: #{tpu_custom_call.1} parent=5 // pred_check
        _
      $region62: #{tpu_custom_call.1} parent=5 // pred_check_branch
        %361 = sbr.rel (%p358) target = $region64
      $region63: #{tpu_custom_call.1} parent=5 // pred_region
        %s362 = ssub.s32 %s20, 1
        %p363 = scmp.lt.s32.totalorder %s25, 1
        %s364 = scalar_select %p363, %s25, 1
        %s365 = smul.addr %s364, 8
        %s366 = scalar_lea.vmem %s0, %s365
        %p367 = pneg %p46
        %p368 = pneg %p43
        %p369 = scmp.lt.s32.totalorder %s25, 1
        %s370 = scalar_select %p369, %s25, 1
        %s371 = smul.addr %s370, 8
        %s372 = scalar_lea.vmem %s1, %s371
        %p373 = pneg %p72
        %p374 = pneg %p69
        %p375 = scmp.lt.s32.totalorder %s25, 1
        %s376 = scalar_select %p375, %s25, 1
        %s377 = smul.addr %s376, 8
        %s378 = scalar_lea.vmem %s2, %s377
        %p379 = pneg %p98
        %p380 = pneg %p95
        %p381 = pneg %p119
        %p382 = pneg %p116
        %p383 = pneg %p140
        %p384 = pneg %p137
        %p385 = pneg %p161
        %p386 = pneg %p158
        %p387 = pneg %p182
        %p388 = pneg %p179
        %p389 = pneg %p203
        %p390 = pneg %p200
        %p391 = pneg %p224
        %p392 = pneg %p221
        %p393 = pneg %p245
        %p394 = pneg %p242
        %p395 = pneg %p266
        %p396 = pneg %p263
        %p397 = pneg %p292
        %p398 = pneg %p289
        %s399 = sand.u32 %s279, 1
        %s400 = scalar_lea.sflag [#allocation3], %s399
        %s401 = sand.u32 %s279, 1
        %s402 = smul.addr %s401, 8
        %s403 = scalar_lea.vmem [#allocation2], %s402
        %p404 = scmp.lt.s32.totalorder %s25, 1
        %s405 = scalar_select %p404, %s25, 1
        %s406 = smul.addr %s405, 8
        %s407 = scalar_lea.vmem %s0, %s406
        %p408 = scmp.lt.s32.totalorder %s25, 1
        %s409 = scalar_select %p408, %s25, 1
        %s410 = smul.addr %s409, 8
        %s411 = scalar_lea.vmem %s1, %s410
        %p412 = scmp.lt.s32.totalorder %s25, 1
        %s413 = scalar_select %p412, %s25, 1
        %s414 = smul.addr %s413, 8
        %s415 = scalar_lea.vmem %s2, %s414
        %v417 = vld [vmem:[%s407] sm:$0xff]
        %v418 = vpack.c.bf16 %v417, %v417
        %v419 = vld [vmem:[%s411] sm:$0xff]
        %v420 = vpack.c.bf16 %v419, %v419
        %v421 = vld [vmem:[%s415] sm:$0xff]
        %v422 = vpack.c.bf16 %v421, %v421
        %v423 = vld [vmem:[%s3] sm:$0xf]
        %v424 = vld [vmem:[%s3 + $0x4] sm:$0xf]
        %v425 = vld [vmem:[%s3 + $0x8] sm:$0xf]
        %v426 = vld [vmem:[%s3 + $0xc] sm:$0xf]
        %v427 = vld [vmem:[%s3 + $0x10] sm:$0xf]
        %v428 = vld [vmem:[%s3 + $0x14] sm:$0xf]
        %v429 = vld [vmem:[%s3 + $0x18] sm:$0xf]
        %v430 = vld [vmem:[%s3 + $0x1c] sm:$0xf]
        %v431 = vld [vmem:[%s3 + $0x20] sm:$0xf]
        %v432 = vld [vmem:[%s3 + $0x24] sm:$0xf]
        %v433 = vld [vmem:[%s3 + $0x28] sm:$0xf]
        %v434 = vld [vmem:[%s3 + $0x2c] sm:$0xf]
        %v435 = vld [vmem:[%s3 + $0x30] sm:$0xf]
        %v436 = vld [vmem:[%s3 + $0x34] sm:$0xf]
        %v437 = vld [vmem:[%s3 + $0x38] sm:$0xf]
        %v438 = vld [vmem:[%s3 + $0x3c] sm:$0xf]
        %v439 = vld [vmem:[%s4] sm:$0x1]
        %v440 = vld [vmem:[%s4 + $0x1] sm:$0x1]
        %v441 = vld [vmem:[%s4 + $0x2] sm:$0x1]
        %v442 = vld [vmem:[%s4 + $0x3] sm:$0x1]
        %v447 = vlaneseq
        %v448 = vshrl.u32 %v447, 7
        %v449 = vsub.s32 0, %v448
        %v450 = vrot.slane %v439, %v449
        %v451 = vlaneseq
        %v452 = vshrl.u32 %v451, 7
        %v453 = vsub.s32 0, %v452
        %v454 = vrot.slane %v440, %v453
        %v455 = vlaneseq
        %v456 = vshrl.u32 %v455, 7
        %v457 = vsub.s32 0, %v456
        %v458 = vrot.slane %v441, %v457
        %v459 = vlaneseq
        %v460 = vshrl.u32 %v459, 7
        %v461 = vsub.s32 0, %v460
        %v462 = vrot.slane %v442, %v461
        %v471 = vunpack.c.l.b16 %v423
        %v472 = vunpack.c.l.b16 %v424
        %v473 = vunpack.c.l.b16 %v425
        %v474 = vunpack.c.l.b16 %v426
        %v475 = vpack.c.b16 %v472, %v471
        %v476 = vpack.c.b16 %v474, %v473
        %vm479 = vcmask 261120
        %v481 = vsel %vm479, %v418, 0
        %483 = vmatprep.subr.bf16.mxu0 0
        %484 = vmatpush1.bf16.msra.mxu0 0
        %485 = vmatprep.subr.bf16.mxu0 0
        %486 = vmatpush1.bf16.msra.mxu0 0
        %487 = vmatprep.subr.bf16.mxu0 0
        %488 = vmatpush1.bf16.msra.mxu0 0
        %489 = vmatprep.subr.bf16.mxu0 0
        %490 = vmatpush1.bf16.msra.mxu0 0
        %491 = vmatprep.subr.bf16.mxu0 0
        %492 = vmatpush1.bf16.msra.mxu0 0
        %493 = vmatprep.subr.bf16.mxu0 0
        %494 = vmatpush1.bf16.msra.mxu0 0
        %495 = vmatprep.subr.bf16.mxu0 0
        %496 = vmatpush1.bf16.msra.mxu0 %v476
        %497 = vmatprep.subr.bf16.mxu0 0
        %498 = vmatpush1.bf16.msra.mxu0 %v475
        %499 = vmatprep.subr.bf16.mxu0 0
        %500 = vmatpush2.bf16.msra.mxu0 0
        %501 = vmatprep.subr.bf16.mxu0 0
        %502 = vmatpush2.bf16.msra.mxu0 0
        %503 = vmatprep.subr.bf16.mxu0 0
        %504 = vmatpush2.bf16.msra.mxu0 0
        %505 = vmatprep.subr.bf16.mxu0 0
        %506 = vmatpush2.bf16.msra.mxu0 0
        %507 = vmatprep.subr.bf16.mxu0 0
        %508 = vmatpush2.bf16.msra.mxu0 0
        %509 = vmatprep.subr.bf16.mxu0 0
        %510 = vmatpush2.bf16.msra.mxu0 0
        %511 = vmatprep.subr.bf16.mxu0 0
        %512 = vmatpush2.bf16.msra.mxu0 0
        %513 = vmatprep.subr.bf16.mxu0 0
        %514 = vmatpush2.bf16.msra.mxu0 0
        %515 = vmatprep.mubr.bf16.mxu0 0
        %516 = vmatmul.mubr.bf16.gmra.mxu0 %v481
        %v517 = vpop.f32.mrf.mxu0
        %v518 = vadd.f32 %v450, %v517
        %v519 = vpop.f32.mrf.mxu0
        %v520 = vpop.f32.mrf.mxu0
        %v521 = vpop.f32.mrf.mxu0
        %522 = vdwg.mxu0
        %v527 = vunpack.c.l.b16 %v427
        %v528 = vunpack.c.l.b16 %v428
        %v529 = vunpack.c.l.b16 %v429
        %v530 = vunpack.c.l.b16 %v430
        %v531 = vpack.c.b16 %v528, %v527
        %v532 = vpack.c.b16 %v530, %v529
        %535 = vmatprep.subr.bf16.mxu0 0
        %536 = vmatpush1.bf16.msra.mxu0 0
        %537 = vmatprep.subr.bf16.mxu0 0
        %538 = vmatpush1.bf16.msra.mxu0 0
        %539 = vmatprep.subr.bf16.mxu0 0
        %540 = vmatpush1.bf16.msra.mxu0 0
        %541 = vmatprep.subr.bf16.mxu0 0
        %542 = vmatpush1.bf16.msra.mxu0 0
        %543 = vmatprep.subr.bf16.mxu0 0
        %544 = vmatpush1.bf16.msra.mxu0 0
        %545 = vmatprep.subr.bf16.mxu0 0
        %546 = vmatpush1.bf16.msra.mxu0 0
        %547 = vmatprep.subr.bf16.mxu0 0
        %548 = vmatpush1.bf16.msra.mxu0 %v532
        %549 = vmatprep.subr.bf16.mxu0 0
        %550 = vmatpush1.bf16.msra.mxu0 %v531
        %551 = vmatprep.subr.bf16.mxu0 0
        %552 = vmatpush2.bf16.msra.mxu0 0
        %553 = vmatprep.subr.bf16.mxu0 0
        %554 = vmatpush2.bf16.msra.mxu0 0
        %555 = vmatprep.subr.bf16.mxu0 0
        %556 = vmatpush2.bf16.msra.mxu0 0
        %557 = vmatprep.subr.bf16.mxu0 0
        %558 = vmatpush2.bf16.msra.mxu0 0
        %559 = vmatprep.subr.bf16.mxu0 0
        %560 = vmatpush2.bf16.msra.mxu0 0
        %561 = vmatprep.subr.bf16.mxu0 0
        %562 = vmatpush2.bf16.msra.mxu0 0
        %563 = vmatprep.subr.bf16.mxu0 0
        %564 = vmatpush2.bf16.msra.mxu0 0
        %565 = vmatprep.subr.bf16.mxu0 0
        %566 = vmatpush2.bf16.msra.mxu0 0
        %567 = vmatprep.mubr.bf16.mxu0 0
        %568 = vmatmul.mubr.bf16.gmra.mxu0 %v481
        %v569 = vpop.f32.mrf.mxu0
        %v570 = vadd.f32 %v454, %v569
        %v571 = vpop.f32.mrf.mxu0
        %v572 = vpop.f32.mrf.mxu0
        %v573 = vpop.f32.mrf.mxu0
        %574 = vdwg.mxu0
        %v579 = vunpack.c.l.b16 %v431
        %v580 = vunpack.c.l.b16 %v432
        %v581 = vunpack.c.l.b16 %v433
        %v582 = vunpack.c.l.b16 %v434
        %v583 = vpack.c.b16 %v580, %v579
        %v584 = vpack.c.b16 %v582, %v581
        %587 = vmatprep.subr.bf16.mxu0 0
        %588 = vmatpush1.bf16.msra.mxu0 0
        %589 = vmatprep.subr.bf16.mxu0 0
        %590 = vmatpush1.bf16.msra.mxu0 0
        %591 = vmatprep.subr.bf16.mxu0 0
        %592 = vmatpush1.bf16.msra.mxu0 0
        %593 = vmatprep.subr.bf16.mxu0 0
        %594 = vmatpush1.bf16.msra.mxu0 0
        %595 = vmatprep.subr.bf16.mxu0 0
        %596 = vmatpush1.bf16.msra.mxu0 0
        %597 = vmatprep.subr.bf16.mxu0 0
        %598 = vmatpush1.bf16.msra.mxu0 0
        %599 = vmatprep.subr.bf16.mxu0 0
        %600 = vmatpush1.bf16.msra.mxu0 %v584
        %601 = vmatprep.subr.bf16.mxu0 0
        %602 = vmatpush1.bf16.msra.mxu0 %v583
        %603 = vmatprep.subr.bf16.mxu0 0
        %604 = vmatpush2.bf16.msra.mxu0 0
        %605 = vmatprep.subr.bf16.mxu0 0
        %606 = vmatpush2.bf16.msra.mxu0 0
        %607 = vmatprep.subr.bf16.mxu0 0
        %608 = vmatpush2.bf16.msra.mxu0 0
        %609 = vmatprep.subr.bf16.mxu0 0
        %610 = vmatpush2.bf16.msra.mxu0 0
        %611 = vmatprep.subr.bf16.mxu0 0
        %612 = vmatpush2.bf16.msra.mxu0 0
        %613 = vmatprep.subr.bf16.mxu0 0
        %614 = vmatpush2.bf16.msra.mxu0 0
        %615 = vmatprep.subr.bf16.mxu0 0
        %616 = vmatpush2.bf16.msra.mxu0 0
        %617 = vmatprep.subr.bf16.mxu0 0
        %618 = vmatpush2.bf16.msra.mxu0 0
        %619 = vmatprep.mubr.bf16.mxu0 0
        %620 = vmatmul.mubr.bf16.gmra.mxu0 %v481
        %v621 = vpop.f32.mrf.mxu0
        %v622 = vadd.f32 %v458, %v621
        %v623 = vpop.f32.mrf.mxu0
        %v624 = vpop.f32.mrf.mxu0
        %v625 = vpop.f32.mrf.mxu0
        %626 = vdwg.mxu0
        %v631 = vunpack.c.l.b16 %v435
        %v632 = vunpack.c.l.b16 %v436
        %v633 = vunpack.c.l.b16 %v437
        %v634 = vunpack.c.l.b16 %v438
        %v635 = vpack.c.b16 %v632, %v631
        %v636 = vpack.c.b16 %v634, %v633
        %639 = vmatprep.subr.bf16.mxu0 0
        %640 = vmatpush1.bf16.msra.mxu0 0
        %641 = vmatprep.subr.bf16.mxu0 0
        %642 = vmatpush1.bf16.msra.mxu0 0
        %643 = vmatprep.subr.bf16.mxu0 0
        %644 = vmatpush1.bf16.msra.mxu0 0
        %645 = vmatprep.subr.bf16.mxu0 0
        %646 = vmatpush1.bf16.msra.mxu0 0
        %647 = vmatprep.subr.bf16.mxu0 0
        %648 = vmatpush1.bf16.msra.mxu0 0
        %649 = vmatprep.subr.bf16.mxu0 0
        %650 = vmatpush1.bf16.msra.mxu0 0
        %651 = vmatprep.subr.bf16.mxu0 0
        %652 = vmatpush1.bf16.msra.mxu0 %v636
        %653 = vmatprep.subr.bf16.mxu0 0
        %654 = vmatpush1.bf16.msra.mxu0 %v635
        %655 = vmatprep.subr.bf16.mxu0 0
        %656 = vmatpush2.bf16.msra.mxu0 0
        %657 = vmatprep.subr.bf16.mxu0 0
        %658 = vmatpush2.bf16.msra.mxu0 0
        %659 = vmatprep.subr.bf16.mxu0 0
        %660 = vmatpush2.bf16.msra.mxu0 0
        %661 = vmatprep.subr.bf16.mxu0 0
        %662 = vmatpush2.bf16.msra.mxu0 0
        %663 = vmatprep.subr.bf16.mxu0 0
        %664 = vmatpush2.bf16.msra.mxu0 0
        %665 = vmatprep.subr.bf16.mxu0 0
        %666 = vmatpush2.bf16.msra.mxu0 0
        %667 = vmatprep.subr.bf16.mxu0 0
        %668 = vmatpush2.bf16.msra.mxu0 0
        %669 = vmatprep.subr.bf16.mxu0 0
        %670 = vmatpush2.bf16.msra.mxu0 0
        %671 = vmatprep.mubr.bf16.mxu0 0
        %672 = vmatmul.mubr.bf16.gmra.mxu0 %v481
        %v673 = vpop.f32.mrf.mxu0
        %v674 = vadd.f32 %v462, %v673
        %v675 = vpop.f32.mrf.mxu0
        %v676 = vpop.f32.mrf.mxu0
        %v677 = vpop.f32.mrf.mxu0
        %678 = vdwg.mxu0
        %v679 = vld [vmem:[%s5] sm:$0xf]
        %v680 = vld [vmem:[%s5 + $0x4] sm:$0xf]
        %v681 = vld [vmem:[%s5 + $0x8] sm:$0xf]
        %v682 = vld [vmem:[%s5 + $0xc] sm:$0xf]
        %v683 = vld [vmem:[%s5 + $0x10] sm:$0xf]
        %v684 = vld [vmem:[%s5 + $0x14] sm:$0xf]
        %v685 = vld [vmem:[%s5 + $0x18] sm:$0xf]
        %v686 = vld [vmem:[%s5 + $0x1c] sm:$0xf]
        %v687 = vld [vmem:[%s5 + $0x20] sm:$0xf]
        %v688 = vld [vmem:[%s5 + $0x24] sm:$0xf]
        %v689 = vld [vmem:[%s5 + $0x28] sm:$0xf]
        %v690 = vld [vmem:[%s5 + $0x2c] sm:$0xf]
        %v691 = vld [vmem:[%s5 + $0x30] sm:$0xf]
        %v692 = vld [vmem:[%s5 + $0x34] sm:$0xf]
        %v693 = vld [vmem:[%s5 + $0x38] sm:$0xf]
        %v694 = vld [vmem:[%s5 + $0x3c] sm:$0xf]
        %v695 = vld [vmem:[%s6] sm:$0x1]
        %v696 = vld [vmem:[%s6 + $0x1] sm:$0x1]
        %v697 = vld [vmem:[%s6 + $0x2] sm:$0x1]
        %v698 = vld [vmem:[%s6 + $0x3] sm:$0x1]
        %v703 = vlaneseq
        %v704 = vshrl.u32 %v703, 7
        %v705 = vsub.s32 0, %v704
        %v706 = vrot.slane %v695, %v705
        %v707 = vlaneseq
        %v708 = vshrl.u32 %v707, 7
        %v709 = vsub.s32 0, %v708
        %v710 = vrot.slane %v696, %v709
        %v711 = vlaneseq
        %v712 = vshrl.u32 %v711, 7
        %v713 = vsub.s32 0, %v712
        %v714 = vrot.slane %v697, %v713
        %v715 = vlaneseq
        %v716 = vshrl.u32 %v715, 7
        %v717 = vsub.s32 0, %v716
        %v718 = vrot.slane %v698, %v717
        %v727 = vunpack.c.l.b16 %v679
        %v728 = vunpack.c.l.b16 %v680
        %v729 = vunpack.c.l.b16 %v681
        %v730 = vunpack.c.l.b16 %v682
        %v731 = vpack.c.b16 %v728, %v727
        %v732 = vpack.c.b16 %v730, %v729
        %v736 = vsel %vm479, %v420, 0
        %738 = vmatprep.subr.bf16.mxu0 0
        %739 = vmatpush1.bf16.msra.mxu0 0
        %740 = vmatprep.subr.bf16.mxu0 0
        %741 = vmatpush1.bf16.msra.mxu0 0
        %742 = vmatprep.subr.bf16.mxu0 0
        %743 = vmatpush1.bf16.msra.mxu0 0
        %744 = vmatprep.subr.bf16.mxu0 0
        %745 = vmatpush1.bf16.msra.mxu0 0
        %746 = vmatprep.subr.bf16.mxu0 0
        %747 = vmatpush1.bf16.msra.mxu0 0
        %748 = vmatprep.subr.bf16.mxu0 0
        %749 = vmatpush1.bf16.msra.mxu0 0
        %750 = vmatprep.subr.bf16.mxu0 0
        %751 = vmatpush1.bf16.msra.mxu0 %v732
        %752 = vmatprep.subr.bf16.mxu0 0
        %753 = vmatpush1.bf16.msra.mxu0 %v731
        %754 = vmatprep.subr.bf16.mxu0 0
        %755 = vmatpush2.bf16.msra.mxu0 0
        %756 = vmatprep.subr.bf16.mxu0 0
        %757 = vmatpush2.bf16.msra.mxu0 0
        %758 = vmatprep.subr.bf16.mxu0 0
        %759 = vmatpush2.bf16.msra.mxu0 0
        %760 = vmatprep.subr.bf16.mxu0 0
        %761 = vmatpush2.bf16.msra.mxu0 0
        %762 = vmatprep.subr.bf16.mxu0 0
        %763 = vmatpush2.bf16.msra.mxu0 0
        %764 = vmatprep.subr.bf16.mxu0 0
        %765 = vmatpush2.bf16.msra.mxu0 0
        %766 = vmatprep.subr.bf16.mxu0 0
        %767 = vmatpush2.bf16.msra.mxu0 0
        %768 = vmatprep.subr.bf16.mxu0 0
        %769 = vmatpush2.bf16.msra.mxu0 0
        %770 = vmatprep.mubr.bf16.mxu0 0
        %771 = vmatmul.mubr.bf16.gmra.mxu0 %v736
        %v772 = vpop.f32.mrf.mxu0
        %v773 = vadd.f32 %v706, %v772
        %v774 = vpop.f32.mrf.mxu0
        %v775 = vpop.f32.mrf.mxu0
        %v776 = vpop.f32.mrf.mxu0
        %777 = vdwg.mxu0
        %v782 = vunpack.c.l.b16 %v683
        %v783 = vunpack.c.l.b16 %v684
        %v784 = vunpack.c.l.b16 %v685
        %v785 = vunpack.c.l.b16 %v686
        %v786 = vpack.c.b16 %v783, %v782
        %v787 = vpack.c.b16 %v785, %v784
        %790 = vmatprep.subr.bf16.mxu0 0
        %791 = vmatpush1.bf16.msra.mxu0 0
        %792 = vmatprep.subr.bf16.mxu0 0
        %793 = vmatpush1.bf16.msra.mxu0 0
        %794 = vmatprep.subr.bf16.mxu0 0
        %795 = vmatpush1.bf16.msra.mxu0 0
        %796 = vmatprep.subr.bf16.mxu0 0
        %797 = vmatpush1.bf16.msra.mxu0 0
        %798 = vmatprep.subr.bf16.mxu0 0
        %799 = vmatpush1.bf16.msra.mxu0 0
        %800 = vmatprep.subr.bf16.mxu0 0
        %801 = vmatpush1.bf16.msra.mxu0 0
        %802 = vmatprep.subr.bf16.mxu0 0
        %803 = vmatpush1.bf16.msra.mxu0 %v787
        %804 = vmatprep.subr.bf16.mxu0 0
        %805 = vmatpush1.bf16.msra.mxu0 %v786
        %806 = vmatprep.subr.bf16.mxu0 0
        %807 = vmatpush2.bf16.msra.mxu0 0
        %808 = vmatprep.subr.bf16.mxu0 0
        %809 = vmatpush2.bf16.msra.mxu0 0
        %810 = vmatprep.subr.bf16.mxu0 0
        %811 = vmatpush2.bf16.msra.mxu0 0
        %812 = vmatprep.subr.bf16.mxu0 0
        %813 = vmatpush2.bf16.msra.mxu0 0
        %814 = vmatprep.subr.bf16.mxu0 0
        %815 = vmatpush2.bf16.msra.mxu0 0
        %816 = vmatprep.subr.bf16.mxu0 0
        %817 = vmatpush2.bf16.msra.mxu0 0
        %818 = vmatprep.subr.bf16.mxu0 0
        %819 = vmatpush2.bf16.msra.mxu0 0
        %820 = vmatprep.subr.bf16.mxu0 0
        %821 = vmatpush2.bf16.msra.mxu0 0
        %822 = vmatprep.mubr.bf16.mxu0 0
        %823 = vmatmul.mubr.bf16.gmra.mxu0 %v736
        %v824 = vpop.f32.mrf.mxu0
        %v825 = vadd.f32 %v710, %v824
        %v826 = vpop.f32.mrf.mxu0
        %v827 = vpop.f32.mrf.mxu0
        %v828 = vpop.f32.mrf.mxu0
        %829 = vdwg.mxu0
        %v834 = vunpack.c.l.b16 %v687
        %v835 = vunpack.c.l.b16 %v688
        %v836 = vunpack.c.l.b16 %v689
        %v837 = vunpack.c.l.b16 %v690
        %v838 = vpack.c.b16 %v835, %v834
        %v839 = vpack.c.b16 %v837, %v836
        %842 = vmatprep.subr.bf16.mxu0 0
        %843 = vmatpush1.bf16.msra.mxu0 0
        %844 = vmatprep.subr.bf16.mxu0 0
        %845 = vmatpush1.bf16.msra.mxu0 0
        %846 = vmatprep.subr.bf16.mxu0 0
        %847 = vmatpush1.bf16.msra.mxu0 0
        %848 = vmatprep.subr.bf16.mxu0 0
        %849 = vmatpush1.bf16.msra.mxu0 0
        %850 = vmatprep.subr.bf16.mxu0 0
        %851 = vmatpush1.bf16.msra.mxu0 0
        %852 = vmatprep.subr.bf16.mxu0 0
        %853 = vmatpush1.bf16.msra.mxu0 0
        %854 = vmatprep.subr.bf16.mxu0 0
        %855 = vmatpush1.bf16.msra.mxu0 %v839
        %856 = vmatprep.subr.bf16.mxu0 0
        %857 = vmatpush1.bf16.msra.mxu0 %v838
        %858 = vmatprep.subr.bf16.mxu0 0
        %859 = vmatpush2.bf16.msra.mxu0 0
        %860 = vmatprep.subr.bf16.mxu0 0
        %861 = vmatpush2.bf16.msra.mxu0 0
        %862 = vmatprep.subr.bf16.mxu0 0
        %863 = vmatpush2.bf16.msra.mxu0 0
        %864 = vmatprep.subr.bf16.mxu0 0
        %865 = vmatpush2.bf16.msra.mxu0 0
        %866 = vmatprep.subr.bf16.mxu0 0
        %867 = vmatpush2.bf16.msra.mxu0 0
        %868 = vmatprep.subr.bf16.mxu0 0
        %869 = vmatpush2.bf16.msra.mxu0 0
        %870 = vmatprep.subr.bf16.mxu0 0
        %871 = vmatpush2.bf16.msra.mxu0 0
        %872 = vmatprep.subr.bf16.mxu0 0
        %873 = vmatpush2.bf16.msra.mxu0 0
        %874 = vmatprep.mubr.bf16.mxu0 0
        %875 = vmatmul.mubr.bf16.gmra.mxu0 %v736
        %v876 = vpop.f32.mrf.mxu0
        %v877 = vadd.f32 %v714, %v876
        %v878 = vpop.f32.mrf.mxu0
        %v879 = vpop.f32.mrf.mxu0
        %v880 = vpop.f32.mrf.mxu0
        %881 = vdwg.mxu0
        %v886 = vunpack.c.l.b16 %v691
        %v887 = vunpack.c.l.b16 %v692
        %v888 = vunpack.c.l.b16 %v693
        %v889 = vunpack.c.l.b16 %v694
        %v890 = vpack.c.b16 %v887, %v886
        %v891 = vpack.c.b16 %v889, %v888
        %894 = vmatprep.subr.bf16.mxu0 0
        %895 = vmatpush1.bf16.msra.mxu0 0
        %896 = vmatprep.subr.bf16.mxu0 0
        %897 = vmatpush1.bf16.msra.mxu0 0
        %898 = vmatprep.subr.bf16.mxu0 0
        %899 = vmatpush1.bf16.msra.mxu0 0
        %900 = vmatprep.subr.bf16.mxu0 0
        %901 = vmatpush1.bf16.msra.mxu0 0
        %902 = vmatprep.subr.bf16.mxu0 0
        %903 = vmatpush1.bf16.msra.mxu0 0
        %904 = vmatprep.subr.bf16.mxu0 0
        %905 = vmatpush1.bf16.msra.mxu0 0
        %906 = vmatprep.subr.bf16.mxu0 0
        %907 = vmatpush1.bf16.msra.mxu0 %v891
        %908 = vmatprep.subr.bf16.mxu0 0
        %909 = vmatpush1.bf16.msra.mxu0 %v890
        %910 = vmatprep.subr.bf16.mxu0 0
        %911 = vmatpush2.bf16.msra.mxu0 0
        %912 = vmatprep.subr.bf16.mxu0 0
        %913 = vmatpush2.bf16.msra.mxu0 0
        %914 = vmatprep.subr.bf16.mxu0 0
        %915 = vmatpush2.bf16.msra.mxu0 0
        %916 = vmatprep.subr.bf16.mxu0 0
        %917 = vmatpush2.bf16.msra.mxu0 0
        %918 = vmatprep.subr.bf16.mxu0 0
        %919 = vmatpush2.bf16.msra.mxu0 0
        %920 = vmatprep.subr.bf16.mxu0 0
        %921 = vmatpush2.bf16.msra.mxu0 0
        %922 = vmatprep.subr.bf16.mxu0 0
        %923 = vmatpush2.bf16.msra.mxu0 0
        %924 = vmatprep.subr.bf16.mxu0 0
        %925 = vmatpush2.bf16.msra.mxu0 0
        %926 = vmatprep.mubr.bf16.mxu0 0
        %927 = vmatmul.mubr.bf16.gmra.mxu0 %v736
        %v928 = vpop.f32.mrf.mxu0
        %v929 = vadd.f32 %v718, %v928
        %v930 = vpop.f32.mrf.mxu0
        %v931 = vpop.f32.mrf.mxu0
        %v932 = vpop.f32.mrf.mxu0
        %933 = vdwg.mxu0
        %v934 = vld [vmem:[%s7] sm:$0xf]
        %v935 = vld [vmem:[%s7 + $0x4] sm:$0xf]
        %v936 = vld [vmem:[%s7 + $0x8] sm:$0xf]
        %v937 = vld [vmem:[%s7 + $0xc] sm:$0xf]
        %v938 = vld [vmem:[%s7 + $0x10] sm:$0xf]
        %v939 = vld [vmem:[%s7 + $0x14] sm:$0xf]
        %v940 = vld [vmem:[%s7 + $0x18] sm:$0xf]
        %v941 = vld [vmem:[%s7 + $0x1c] sm:$0xf]
        %v942 = vld [vmem:[%s7 + $0x20] sm:$0xf]
        %v943 = vld [vmem:[%s7 + $0x24] sm:$0xf]
        %v944 = vld [vmem:[%s7 + $0x28] sm:$0xf]
        %v945 = vld [vmem:[%s7 + $0x2c] sm:$0xf]
        %v946 = vld [vmem:[%s7 + $0x30] sm:$0xf]
        %v947 = vld [vmem:[%s7 + $0x34] sm:$0xf]
        %v948 = vld [vmem:[%s7 + $0x38] sm:$0xf]
        %v949 = vld [vmem:[%s7 + $0x3c] sm:$0xf]
        %v950 = vld [vmem:[%s8] sm:$0x1]
        %v951 = vld [vmem:[%s8 + $0x1] sm:$0x1]
        %v952 = vld [vmem:[%s8 + $0x2] sm:$0x1]
        %v953 = vld [vmem:[%s8 + $0x3] sm:$0x1]
        %v958 = vlaneseq
        %v959 = vshrl.u32 %v958, 7
        %v960 = vsub.s32 0, %v959
        %v961 = vrot.slane %v950, %v960
        %v962 = vlaneseq
        %v963 = vshrl.u32 %v962, 7
        %v964 = vsub.s32 0, %v963
        %v965 = vrot.slane %v951, %v964
        %v966 = vlaneseq
        %v967 = vshrl.u32 %v966, 7
        %v968 = vsub.s32 0, %v967
        %v969 = vrot.slane %v952, %v968
        %v970 = vlaneseq
        %v971 = vshrl.u32 %v970, 7
        %v972 = vsub.s32 0, %v971
        %v973 = vrot.slane %v953, %v972
        %v982 = vunpack.c.l.b16 %v934
        %v983 = vunpack.c.l.b16 %v935
        %v984 = vunpack.c.l.b16 %v936
        %v985 = vunpack.c.l.b16 %v937
        %v986 = vpack.c.b16 %v983, %v982
        %v987 = vpack.c.b16 %v985, %v984
        %v991 = vsel %vm479, %v422, 0
        %993 = vmatprep.subr.bf16.mxu0 0
        %994 = vmatpush1.bf16.msra.mxu0 0
        %995 = vmatprep.subr.bf16.mxu0 0
        %996 = vmatpush1.bf16.msra.mxu0 0
        %997 = vmatprep.subr.bf16.mxu0 0
        %998 = vmatpush1.bf16.msra.mxu0 0
        %999 = vmatprep.subr.bf16.mxu0 0
        %1000 = vmatpush1.bf16.msra.mxu0 0
        %1001 = vmatprep.subr.bf16.mxu0 0
        %1002 = vmatpush1.bf16.msra.mxu0 0
        %1003 = vmatprep.subr.bf16.mxu0 0
        %1004 = vmatpush1.bf16.msra.mxu0 0
        %1005 = vmatprep.subr.bf16.mxu0 0
        %1006 = vmatpush1.bf16.msra.mxu0 %v987
        %1007 = vmatprep.subr.bf16.mxu0 0
        %1008 = vmatpush1.bf16.msra.mxu0 %v986
        %1009 = vmatprep.subr.bf16.mxu0 0
        %1010 = vmatpush2.bf16.msra.mxu0 0
        %1011 = vmatprep.subr.bf16.mxu0 0
        %1012 = vmatpush2.bf16.msra.mxu0 0
        %1013 = vmatprep.subr.bf16.mxu0 0
        %1014 = vmatpush2.bf16.msra.mxu0 0
        %1015 = vmatprep.subr.bf16.mxu0 0
        %1016 = vmatpush2.bf16.msra.mxu0 0
        %1017 = vmatprep.subr.bf16.mxu0 0
        %1018 = vmatpush2.bf16.msra.mxu0 0
        %1019 = vmatprep.subr.bf16.mxu0 0
        %1020 = vmatpush2.bf16.msra.mxu0 0
        %1021 = vmatprep.subr.bf16.mxu0 0
        %1022 = vmatpush2.bf16.msra.mxu0 0
        %1023 = vmatprep.subr.bf16.mxu0 0
        %1024 = vmatpush2.bf16.msra.mxu0 0
        %1025 = vmatprep.mubr.bf16.mxu0 0
        %1026 = vmatmul.mubr.bf16.gmra.mxu0 %v991
        %v1027 = vpop.f32.mrf.mxu0
        %v1028 = vadd.f32 %v961, %v1027
        %v1029 = vpop.f32.mrf.mxu0
        %v1030 = vpop.f32.mrf.mxu0
        %v1031 = vpop.f32.mrf.mxu0
        %1032 = vdwg.mxu0
        %v1037 = vunpack.c.l.b16 %v938
        %v1038 = vunpack.c.l.b16 %v939
        %v1039 = vunpack.c.l.b16 %v940
        %v1040 = vunpack.c.l.b16 %v941
        %v1041 = vpack.c.b16 %v1038, %v1037
        %v1042 = vpack.c.b16 %v1040, %v1039
        %1045 = vmatprep.subr.bf16.mxu0 0
        %1046 = vmatpush1.bf16.msra.mxu0 0
        %1047 = vmatprep.subr.bf16.mxu0 0
        %1048 = vmatpush1.bf16.msra.mxu0 0
        %1049 = vmatprep.subr.bf16.mxu0 0
        %1050 = vmatpush1.bf16.msra.mxu0 0
        %1051 = vmatprep.subr.bf16.mxu0 0
        %1052 = vmatpush1.bf16.msra.mxu0 0
        %1053 = vmatprep.subr.bf16.mxu0 0
        %1054 = vmatpush1.bf16.msra.mxu0 0
        %1055 = vmatprep.subr.bf16.mxu0 0
        %1056 = vmatpush1.bf16.msra.mxu0 0
        %1057 = vmatprep.subr.bf16.mxu0 0
        %1058 = vmatpush1.bf16.msra.mxu0 %v1042
        %1059 = vmatprep.subr.bf16.mxu0 0
        %1060 = vmatpush1.bf16.msra.mxu0 %v1041
        %1061 = vmatprep.subr.bf16.mxu0 0
        %1062 = vmatpush2.bf16.msra.mxu0 0
        %1063 = vmatprep.subr.bf16.mxu0 0
        %1064 = vmatpush2.bf16.msra.mxu0 0
        %1065 = vmatprep.subr.bf16.mxu0 0
        %1066 = vmatpush2.bf16.msra.mxu0 0
        %1067 = vmatprep.subr.bf16.mxu0 0
        %1068 = vmatpush2.bf16.msra.mxu0 0
        %1069 = vmatprep.subr.bf16.mxu0 0
        %1070 = vmatpush2.bf16.msra.mxu0 0
        %1071 = vmatprep.subr.bf16.mxu0 0
        %1072 = vmatpush2.bf16.msra.mxu0 0
        %1073 = vmatprep.subr.bf16.mxu0 0
        %1074 = vmatpush2.bf16.msra.mxu0 0
        %1075 = vmatprep.subr.bf16.mxu0 0
        %1076 = vmatpush2.bf16.msra.mxu0 0
        %1077 = vmatprep.mubr.bf16.mxu0 0
        %1078 = vmatmul.mubr.bf16.gmra.mxu0 %v991
        %v1079 = vpop.f32.mrf.mxu0
        %v1080 = vadd.f32 %v965, %v1079
        %v1081 = vpop.f32.mrf.mxu0
        %v1082 = vpop.f32.mrf.mxu0
        %v1083 = vpop.f32.mrf.mxu0
        %1084 = vdwg.mxu0
        %v1089 = vunpack.c.l.b16 %v942
        %v1090 = vunpack.c.l.b16 %v943
        %v1091 = vunpack.c.l.b16 %v944
        %v1092 = vunpack.c.l.b16 %v945
        %v1093 = vpack.c.b16 %v1090, %v1089
        %v1094 = vpack.c.b16 %v1092, %v1091
        %1097 = vmatprep.subr.bf16.mxu0 0
        %1098 = vmatpush1.bf16.msra.mxu0 0
        %1099 = vmatprep.subr.bf16.mxu0 0
        %1100 = vmatpush1.bf16.msra.mxu0 0
        %1101 = vmatprep.subr.bf16.mxu0 0
        %1102 = vmatpush1.bf16.msra.mxu0 0
        %1103 = vmatprep.subr.bf16.mxu0 0
        %1104 = vmatpush1.bf16.msra.mxu0 0
        %1105 = vmatprep.subr.bf16.mxu0 0
        %1106 = vmatpush1.bf16.msra.mxu0 0
        %1107 = vmatprep.subr.bf16.mxu0 0
        %1108 = vmatpush1.bf16.msra.mxu0 0
        %1109 = vmatprep.subr.bf16.mxu0 0
        %1110 = vmatpush1.bf16.msra.mxu0 %v1094
        %1111 = vmatprep.subr.bf16.mxu0 0
        %1112 = vmatpush1.bf16.msra.mxu0 %v1093
        %1113 = vmatprep.subr.bf16.mxu0 0
        %1114 = vmatpush2.bf16.msra.mxu0 0
        %1115 = vmatprep.subr.bf16.mxu0 0
        %1116 = vmatpush2.bf16.msra.mxu0 0
        %1117 = vmatprep.subr.bf16.mxu0 0
        %1118 = vmatpush2.bf16.msra.mxu0 0
        %1119 = vmatprep.subr.bf16.mxu0 0
        %1120 = vmatpush2.bf16.msra.mxu0 0
        %1121 = vmatprep.subr.bf16.mxu0 0
        %1122 = vmatpush2.bf16.msra.mxu0 0
        %1123 = vmatprep.subr.bf16.mxu0 0
        %1124 = vmatpush2.bf16.msra.mxu0 0
        %1125 = vmatprep.subr.bf16.mxu0 0
        %1126 = vmatpush2.bf16.msra.mxu0 0
        %1127 = vmatprep.subr.bf16.mxu0 0
        %1128 = vmatpush2.bf16.msra.mxu0 0
        %1129 = vmatprep.mubr.bf16.mxu0 0
        %1130 = vmatmul.mubr.bf16.gmra.mxu0 %v991
        %v1131 = vpop.f32.mrf.mxu0
        %v1132 = vadd.f32 %v969, %v1131
        %v1133 = vpop.f32.mrf.mxu0
        %v1134 = vpop.f32.mrf.mxu0
        %v1135 = vpop.f32.mrf.mxu0
        %1136 = vdwg.mxu0
        %v1141 = vunpack.c.l.b16 %v946
        %v1142 = vunpack.c.l.b16 %v947
        %v1143 = vunpack.c.l.b16 %v948
        %v1144 = vunpack.c.l.b16 %v949
        %v1145 = vpack.c.b16 %v1142, %v1141
        %v1146 = vpack.c.b16 %v1144, %v1143
        %1149 = vmatprep.subr.bf16.mxu0 0
        %1150 = vmatpush1.bf16.msra.mxu0 0
        %1151 = vmatprep.subr.bf16.mxu0 0
        %1152 = vmatpush1.bf16.msra.mxu0 0
        %1153 = vmatprep.subr.bf16.mxu0 0
        %1154 = vmatpush1.bf16.msra.mxu0 0
        %1155 = vmatprep.subr.bf16.mxu0 0
        %1156 = vmatpush1.bf16.msra.mxu0 0
        %1157 = vmatprep.subr.bf16.mxu0 0
        %1158 = vmatpush1.bf16.msra.mxu0 0
        %1159 = vmatprep.subr.bf16.mxu0 0
        %1160 = vmatpush1.bf16.msra.mxu0 0
        %1161 = vmatprep.subr.bf16.mxu0 0
        %1162 = vmatpush1.bf16.msra.mxu0 %v1146
        %1163 = vmatprep.subr.bf16.mxu0 0
        %1164 = vmatpush1.bf16.msra.mxu0 %v1145
        %1165 = vmatprep.subr.bf16.mxu0 0
        %1166 = vmatpush2.bf16.msra.mxu0 0
        %1167 = vmatprep.subr.bf16.mxu0 0
        %1168 = vmatpush2.bf16.msra.mxu0 0
        %1169 = vmatprep.subr.bf16.mxu0 0
        %1170 = vmatpush2.bf16.msra.mxu0 0
        %1171 = vmatprep.subr.bf16.mxu0 0
        %1172 = vmatpush2.bf16.msra.mxu0 0
        %1173 = vmatprep.subr.bf16.mxu0 0
        %1174 = vmatpush2.bf16.msra.mxu0 0
        %1175 = vmatprep.subr.bf16.mxu0 0
        %1176 = vmatpush2.bf16.msra.mxu0 0
        %1177 = vmatprep.subr.bf16.mxu0 0
        %1178 = vmatpush2.bf16.msra.mxu0 0
        %1179 = vmatprep.subr.bf16.mxu0 0
        %1180 = vmatpush2.bf16.msra.mxu0 0
        %1181 = vmatprep.mubr.bf16.mxu0 0
        %1182 = vmatmul.mubr.bf16.gmra.mxu0 %v991
        %v1183 = vpop.f32.mrf.mxu0
        %v1184 = vadd.f32 %v973, %v1183
        %v1185 = vpop.f32.mrf.mxu0
        %v1186 = vpop.f32.mrf.mxu0
        %v1187 = vpop.f32.mrf.mxu0
        %1188 = vdwg.mxu0
        %v1189 = vpack.c.bf16 %v518, %v518
        %v1190 = vpack.c.bf16 %v570, %v570
        %v1191 = vpack.c.bf16 %v622, %v622
        %v1192 = vpack.c.bf16 %v674, %v674
        %v1193 = vpack.c.bf16 %v773, %v773
        %v1194 = vpack.c.bf16 %v825, %v825
        %v1195 = vpack.c.bf16 %v877, %v877
        %v1196 = vpack.c.bf16 %v929, %v929
        %vm1197 = vcmask 64512
        %v1199 = vsel %vm1197, %v1189, 0
        %v1202 = vsel %vm1197, %v1193, 0
        %1204 = vmatprep.subr.bf16.mxu0 0
        %1205 = vmatpush1.bf16.xpose.msra.mxu0 0
        %1206 = vmatprep.subr.bf16.mxu0 0
        %1207 = vmatpush1.bf16.xpose.msra.mxu0 0
        %1208 = vmatprep.subr.bf16.mxu0 0
        %1209 = vmatpush1.bf16.xpose.msra.mxu0 0
        %1210 = vmatprep.subr.bf16.mxu0 0
        %1211 = vmatpush1.bf16.xpose.msra.mxu0 0
        %1212 = vmatprep.subr.bf16.mxu0 0
        %1213 = vmatpush1.bf16.xpose.msra.mxu0 0
        %1214 = vmatprep.subr.bf16.mxu0 0
        %1215 = vmatpush1.bf16.xpose.msra.mxu0 0
        %1216 = vmatprep.subr.bf16.mxu0 0
        %1217 = vmatpush1.bf16.xpose.msra.mxu0 0
        %1218 = vmatprep.subr.bf16.mxu0 0
        %1219 = vmatpush1.bf16.xpose.msra.mxu0 %v1202
        %1220 = vmatprep.subr.bf16.mxu0 0
        %1221 = vmatpush2.bf16.xpose.msra.mxu0 0
        %1222 = vmatprep.subr.bf16.mxu0 0
        %1223 = vmatpush2.bf16.xpose.msra.mxu0 0
        %1224 = vmatprep.subr.bf16.mxu0 0
        %1225 = vmatpush2.bf16.xpose.msra.mxu0 0
        %1226 = vmatprep.subr.bf16.mxu0 0
        %1227 = vmatpush2.bf16.xpose.msra.mxu0 0
        %1228 = vmatprep.subr.bf16.mxu0 0
        %1229 = vmatpush2.bf16.xpose.msra.mxu0 0
        %1230 = vmatprep.subr.bf16.mxu0 0
        %1231 = vmatpush2.bf16.xpose.msra.mxu0 0
        %1232 = vmatprep.subr.bf16.mxu0 0
        %1233 = vmatpush2.bf16.xpose.msra.mxu0 0
        %1234 = vmatprep.subr.bf16.mxu0 0
        %1235 = vmatpush2.bf16.xpose.msra.mxu0 0
        %1236 = vmatprep.mubr.bf16.mxu0 0
        %1237 = vmatmul.mubr.bf16.gmra.mxu0 %v1199
        %v1238 = vpop.f32.mrf.mxu0
        %v1239 = vadd.f32 0.0, %v1238
        %v1240 = vpop.f32.mrf.mxu0
        %v1241 = vpop.f32.mrf.mxu0
        %v1242 = vpop.f32.mrf.mxu0
        %1243 = vdwg.mxu0
        %v1245 = vsel %vm1197, %v1190, 0
        %v1248 = vsel %vm1197, %v1194, 0
        %1250 = vmatprep.subr.bf16.mxu0 0
        %1251 = vmatpush1.bf16.xpose.msra.mxu0 0
        %1252 = vmatprep.subr.bf16.mxu0 0
        %1253 = vmatpush1.bf16.xpose.msra.mxu0 0
        %1254 = vmatprep.subr.bf16.mxu0 0
        %1255 = vmatpush1.bf16.xpose.msra.mxu0 0
        %1256 = vmatprep.subr.bf16.mxu0 0
        %1257 = vmatpush1.bf16.xpose.msra.mxu0 0
        %1258 = vmatprep.subr.bf16.mxu0 0
        %1259 = vmatpush1.bf16.xpose.msra.mxu0 0
        %1260 = vmatprep.subr.bf16.mxu0 0
        %1261 = vmatpush1.bf16.xpose.msra.mxu0 0
        %1262 = vmatprep.subr.bf16.mxu0 0
        %1263 = vmatpush1.bf16.xpose.msra.mxu0 0
        %1264 = vmatprep.subr.bf16.mxu0 0
        %1265 = vmatpush1.bf16.xpose.msra.mxu0 %v1248
        %1266 = vmatprep.subr.bf16.mxu0 0
        %1267 = vmatpush2.bf16.xpose.msra.mxu0 0
        %1268 = vmatprep.subr.bf16.mxu0 0
        %1269 = vmatpush2.bf16.xpose.msra.mxu0 0
        %1270 = vmatprep.subr.bf16.mxu0 0
        %1271 = vmatpush2.bf16.xpose.msra.mxu0 0
        %1272 = vmatprep.subr.bf16.mxu0 0
        %1273 = vmatpush2.bf16.xpose.msra.mxu0 0
        %1274 = vmatprep.subr.bf16.mxu0 0
        %1275 = vmatpush2.bf16.xpose.msra.mxu0 0
        %1276 = vmatprep.subr.bf16.mxu0 0
        %1277 = vmatpush2.bf16.xpose.msra.mxu0 0
        %1278 = vmatprep.subr.bf16.mxu0 0
        %1279 = vmatpush2.bf16.xpose.msra.mxu0 0
        %1280 = vmatprep.subr.bf16.mxu0 0
        %1281 = vmatpush2.bf16.xpose.msra.mxu0 0
        %1282 = vmatprep.mubr.bf16.mxu0 0
        %1283 = vmatmul.mubr.bf16.gmra.mxu0 %v1245
        %v1284 = vpop.f32.mrf.mxu0
        %v1285 = vadd.f32 0.0, %v1284
        %v1286 = vpop.f32.mrf.mxu0
        %v1287 = vpop.f32.mrf.mxu0
        %v1288 = vpop.f32.mrf.mxu0
        %1289 = vdwg.mxu0
        %v1291 = vsel %vm1197, %v1191, 0
        %v1294 = vsel %vm1197, %v1195, 0
        %1296 = vmatprep.subr.bf16.mxu0 0
        %1297 = vmatpush1.bf16.xpose.msra.mxu0 0
        %1298 = vmatprep.subr.bf16.mxu0 0
        %1299 = vmatpush1.bf16.xpose.msra.mxu0 0
        %1300 = vmatprep.subr.bf16.mxu0 0
        %1301 = vmatpush1.bf16.xpose.msra.mxu0 0
        %1302 = vmatprep.subr.bf16.mxu0 0
        %1303 = vmatpush1.bf16.xpose.msra.mxu0 0
        %1304 = vmatprep.subr.bf16.mxu0 0
        %1305 = vmatpush1.bf16.xpose.msra.mxu0 0
        %1306 = vmatprep.subr.bf16.mxu0 0
        %1307 = vmatpush1.bf16.xpose.msra.mxu0 0
        %1308 = vmatprep.subr.bf16.mxu0 0
        %1309 = vmatpush1.bf16.xpose.msra.mxu0 0
        %1310 = vmatprep.subr.bf16.mxu0 0
        %1311 = vmatpush1.bf16.xpose.msra.mxu0 %v1294
        %1312 = vmatprep.subr.bf16.mxu0 0
        %1313 = vmatpush2.bf16.xpose.msra.mxu0 0
        %1314 = vmatprep.subr.bf16.mxu0 0
        %1315 = vmatpush2.bf16.xpose.msra.mxu0 0
        %1316 = vmatprep.subr.bf16.mxu0 0
        %1317 = vmatpush2.bf16.xpose.msra.mxu0 0
        %1318 = vmatprep.subr.bf16.mxu0 0
        %1319 = vmatpush2.bf16.xpose.msra.mxu0 0
        %1320 = vmatprep.subr.bf16.mxu0 0
        %1321 = vmatpush2.bf16.xpose.msra.mxu0 0
        %1322 = vmatprep.subr.bf16.mxu0 0
        %1323 = vmatpush2.bf16.xpose.msra.mxu0 0
        %1324 = vmatprep.subr.bf16.mxu0 0
        %1325 = vmatpush2.bf16.xpose.msra.mxu0 0
        %1326 = vmatprep.subr.bf16.mxu0 0
        %1327 = vmatpush2.bf16.xpose.msra.mxu0 0
        %1328 = vmatprep.mubr.bf16.mxu0 0
        %1329 = vmatmul.mubr.bf16.gmra.mxu0 %v1291
        %v1330 = vpop.f32.mrf.mxu0
        %v1331 = vadd.f32 0.0, %v1330
        %v1332 = vpop.f32.mrf.mxu0
        %v1333 = vpop.f32.mrf.mxu0
        %v1334 = vpop.f32.mrf.mxu0
        %1335 = vdwg.mxu0
        %v1337 = vsel %vm1197, %v1192, 0
        %v1340 = vsel %vm1197, %v1196, 0
        %1342 = vmatprep.subr.bf16.mxu0 0
        %1343 = vmatpush1.bf16.xpose.msra.mxu0 0
        %1344 = vmatprep.subr.bf16.mxu0 0
        %1345 = vmatpush1.bf16.xpose.msra.mxu0 0
        %1346 = vmatprep.subr.bf16.mxu0 0
        %1347 = vmatpush1.bf16.xpose.msra.mxu0 0
        %1348 = vmatprep.subr.bf16.mxu0 0
        %1349 = vmatpush1.bf16.xpose.msra.mxu0 0
        %1350 = vmatprep.subr.bf16.mxu0 0
        %1351 = vmatpush1.bf16.xpose.msra.mxu0 0
        %1352 = vmatprep.subr.bf16.mxu0 0
        %1353 = vmatpush1.bf16.xpose.msra.mxu0 0
        %1354 = vmatprep.subr.bf16.mxu0 0
        %1355 = vmatpush1.bf16.xpose.msra.mxu0 0
        %1356 = vmatprep.subr.bf16.mxu0 0
        %1357 = vmatpush1.bf16.xpose.msra.mxu0 %v1340
        %1358 = vmatprep.subr.bf16.mxu0 0
        %1359 = vmatpush2.bf16.xpose.msra.mxu0 0
        %1360 = vmatprep.subr.bf16.mxu0 0
        %1361 = vmatpush2.bf16.xpose.msra.mxu0 0
        %1362 = vmatprep.subr.bf16.mxu0 0
        %1363 = vmatpush2.bf16.xpose.msra.mxu0 0
        %1364 = vmatprep.subr.bf16.mxu0 0
        %1365 = vmatpush2.bf16.xpose.msra.mxu0 0
        %1366 = vmatprep.subr.bf16.mxu0 0
        %1367 = vmatpush2.bf16.xpose.msra.mxu0 0
        %1368 = vmatprep.subr.bf16.mxu0 0
        %1369 = vmatpush2.bf16.xpose.msra.mxu0 0
        %1370 = vmatprep.subr.bf16.mxu0 0
        %1371 = vmatpush2.bf16.xpose.msra.mxu0 0
        %1372 = vmatprep.subr.bf16.mxu0 0
        %1373 = vmatpush2.bf16.xpose.msra.mxu0 0
        %1374 = vmatprep.mubr.bf16.mxu0 0
        %1375 = vmatmul.mubr.bf16.gmra.mxu0 %v1337
        %v1376 = vpop.f32.mrf.mxu0
        %v1377 = vadd.f32 0.0, %v1376
        %v1378 = vpop.f32.mrf.mxu0
        %v1379 = vpop.f32.mrf.mxu0
        %v1380 = vpop.f32.mrf.mxu0
        %1381 = vdwg.mxu0
        %v1382 = vsel %vm1197, %v1239, -inf
        %1383 = vmax.xlane.f32.xlu0 %v1382
        %v1384 = vpop.xlane.xlu0 %1383
        %v1385 = vsel %vm1197, %v1285, -inf
        %1386 = vmax.xlane.f32.xlu0 %v1385
        %v1387 = vpop.xlane.xlu0 %1386
        %v1388 = vsel %vm1197, %v1331, -inf
        %1389 = vmax.xlane.f32.xlu0 %v1388
        %v1390 = vpop.xlane.xlu0 %1389
        %v1391 = vsel %vm1197, %v1377, -inf
        %1392 = vmax.xlane.f32.xlu0 %v1391
        %v1393 = vpop.xlane.xlu0 %1392
        %v1394 = vsub.f32 %v1239, %v1384
        %v1395 = vsub.f32 %v1285, %v1387
        %v1396 = vsub.f32 %v1331, %v1390
        %v1397 = vsub.f32 %v1377, %v1393
        %v1398 = vmul.f32 %v1394, 1.442695
        %v1399 = vpow.pop %v1398
        %v1400 = vmul.f32 %v1395, 1.442695
        %v1401 = vpow.pop %v1400
        %v1402 = vmul.f32 %v1396, 1.442695
        %v1403 = vpow.pop %v1402
        %v1404 = vmul.f32 %v1397, 1.442695
        %v1405 = vpow.pop %v1404
        %v1406 = vsel %vm1197, %v1399, 0.0
        %1407 = vadd.xlane.f32.xlu0 %v1406
        %v1408 = vpop.xlane.xlu0 %1407
        %v1409 = vsel %vm1197, %v1401, 0.0
        %1410 = vadd.xlane.f32.xlu0 %v1409
        %v1411 = vpop.xlane.xlu0 %1410
        %v1412 = vsel %vm1197, %v1403, 0.0
        %1413 = vadd.xlane.f32.xlu0 %v1412
        %v1414 = vpop.xlane.xlu0 %1413
        %v1415 = vsel %vm1197, %v1405, 0.0
        %1416 = vadd.xlane.f32.xlu0 %v1415
        %v1417 = vpop.xlane.xlu0 %1416
        %v1418 = vpack.c.bf16 %v1399, %v1399
        %v1419 = vpack.c.bf16 %v1401, %v1401
        %v1420 = vpack.c.bf16 %v1403, %v1403
        %v1421 = vpack.c.bf16 %v1405, %v1405
        %v1422 = vpack.c.bf16 %v1028, %v1028
        %v1423 = vpack.c.bf16 %v1080, %v1080
        %v1424 = vpack.c.bf16 %v1132, %v1132
        %v1425 = vpack.c.bf16 %v1184, %v1184
        %v1427 = vsel %vm1197, %v1418, 0
        %vm1429 = vcmask 1043456
        %v1431 = vsel %vm1429, %v1422, 0
        %1433 = vmatprep.subr.bf16.mxu0 0
        %1434 = vmatpush1.bf16.msra.mxu0 0
        %1435 = vmatprep.subr.bf16.mxu0 0
        %1436 = vmatpush1.bf16.msra.mxu0 0
        %1437 = vmatprep.subr.bf16.mxu0 0
        %1438 = vmatpush1.bf16.msra.mxu0 0
        %1439 = vmatprep.subr.bf16.mxu0 0
        %1440 = vmatpush1.bf16.msra.mxu0 0
        %1441 = vmatprep.subr.bf16.mxu0 0
        %1442 = vmatpush1.bf16.msra.mxu0 0
        %1443 = vmatprep.subr.bf16.mxu0 0
        %1444 = vmatpush1.bf16.msra.mxu0 0
        %1445 = vmatprep.subr.bf16.mxu0 0
        %1446 = vmatpush1.bf16.msra.mxu0 0
        %1447 = vmatprep.subr.bf16.mxu0 0
        %1448 = vmatpush1.bf16.msra.mxu0 %v1431
        %1449 = vmatprep.subr.bf16.mxu0 0
        %1450 = vmatpush2.bf16.msra.mxu0 0
        %1451 = vmatprep.subr.bf16.mxu0 0
        %1452 = vmatpush2.bf16.msra.mxu0 0
        %1453 = vmatprep.subr.bf16.mxu0 0
        %1454 = vmatpush2.bf16.msra.mxu0 0
        %1455 = vmatprep.subr.bf16.mxu0 0
        %1456 = vmatpush2.bf16.msra.mxu0 0
        %1457 = vmatprep.subr.bf16.mxu0 0
        %1458 = vmatpush2.bf16.msra.mxu0 0
        %1459 = vmatprep.subr.bf16.mxu0 0
        %1460 = vmatpush2.bf16.msra.mxu0 0
        %1461 = vmatprep.subr.bf16.mxu0 0
        %1462 = vmatpush2.bf16.msra.mxu0 0
        %1463 = vmatprep.subr.bf16.mxu0 0
        %1464 = vmatpush2.bf16.msra.mxu0 0
        %1465 = vmatprep.mubr.bf16.mxu0 0
        %1466 = vmatmul.mubr.bf16.gmra.mxu0 %v1427
        %v1467 = vpop.f32.mrf.mxu0
        %v1468 = vadd.f32 0.0, %v1467
        %v1469 = vpop.f32.mrf.mxu0
        %v1470 = vpop.f32.mrf.mxu0
        %v1471 = vpop.f32.mrf.mxu0
        %1472 = vdwg.mxu0
        %v1474 = vsel %vm1197, %v1419, 0
        %v1477 = vsel %vm1429, %v1423, 0
        %1479 = vmatprep.subr.bf16.mxu0 0
        %1480 = vmatpush1.bf16.msra.mxu0 0
        %1481 = vmatprep.subr.bf16.mxu0 0
        %1482 = vmatpush1.bf16.msra.mxu0 0
        %1483 = vmatprep.subr.bf16.mxu0 0
        %1484 = vmatpush1.bf16.msra.mxu0 0
        %1485 = vmatprep.subr.bf16.mxu0 0
        %1486 = vmatpush1.bf16.msra.mxu0 0
        %1487 = vmatprep.subr.bf16.mxu0 0
        %1488 = vmatpush1.bf16.msra.mxu0 0
        %1489 = vmatprep.subr.bf16.mxu0 0
        %1490 = vmatpush1.bf16.msra.mxu0 0
        %1491 = vmatprep.subr.bf16.mxu0 0
        %1492 = vmatpush1.bf16.msra.mxu0 0
        %1493 = vmatprep.subr.bf16.mxu0 0
        %1494 = vmatpush1.bf16.msra.mxu0 %v1477
        %1495 = vmatprep.subr.bf16.mxu0 0
        %1496 = vmatpush2.bf16.msra.mxu0 0
        %1497 = vmatprep.subr.bf16.mxu0 0
        %1498 = vmatpush2.bf16.msra.mxu0 0
        %1499 = vmatprep.subr.bf16.mxu0 0
        %1500 = vmatpush2.bf16.msra.mxu0 0
        %1501 = vmatprep.subr.bf16.mxu0 0
        %1502 = vmatpush2.bf16.msra.mxu0 0
        %1503 = vmatprep.subr.bf16.mxu0 0
        %1504 = vmatpush2.bf16.msra.mxu0 0
        %1505 = vmatprep.subr.bf16.mxu0 0
        %1506 = vmatpush2.bf16.msra.mxu0 0
        %1507 = vmatprep.subr.bf16.mxu0 0
        %1508 = vmatpush2.bf16.msra.mxu0 0
        %1509 = vmatprep.subr.bf16.mxu0 0
        %1510 = vmatpush2.bf16.msra.mxu0 0
        %1511 = vmatprep.mubr.bf16.mxu0 0
        %1512 = vmatmul.mubr.bf16.gmra.mxu0 %v1474
        %v1513 = vpop.f32.mrf.mxu0
        %v1514 = vadd.f32 0.0, %v1513
        %v1515 = vpop.f32.mrf.mxu0
        %v1516 = vpop.f32.mrf.mxu0
        %v1517 = vpop.f32.mrf.mxu0
        %1518 = vdwg.mxu0
        %v1520 = vsel %vm1197, %v1420, 0
        %v1523 = vsel %vm1429, %v1424, 0
        %1525 = vmatprep.subr.bf16.mxu0 0
        %1526 = vmatpush1.bf16.msra.mxu0 0
        %1527 = vmatprep.subr.bf16.mxu0 0
        %1528 = vmatpush1.bf16.msra.mxu0 0
        %1529 = vmatprep.subr.bf16.mxu0 0
        %1530 = vmatpush1.bf16.msra.mxu0 0
        %1531 = vmatprep.subr.bf16.mxu0 0
        %1532 = vmatpush1.bf16.msra.mxu0 0
        %1533 = vmatprep.subr.bf16.mxu0 0
        %1534 = vmatpush1.bf16.msra.mxu0 0
        %1535 = vmatprep.subr.bf16.mxu0 0
        %1536 = vmatpush1.bf16.msra.mxu0 0
        %1537 = vmatprep.subr.bf16.mxu0 0
        %1538 = vmatpush1.bf16.msra.mxu0 0
        %1539 = vmatprep.subr.bf16.mxu0 0
        %1540 = vmatpush1.bf16.msra.mxu0 %v1523
        %1541 = vmatprep.subr.bf16.mxu0 0
        %1542 = vmatpush2.bf16.msra.mxu0 0
        %1543 = vmatprep.subr.bf16.mxu0 0
        %1544 = vmatpush2.bf16.msra.mxu0 0
        %1545 = vmatprep.subr.bf16.mxu0 0
        %1546 = vmatpush2.bf16.msra.mxu0 0
        %1547 = vmatprep.subr.bf16.mxu0 0
        %1548 = vmatpush2.bf16.msra.mxu0 0
        %1549 = vmatprep.subr.bf16.mxu0 0
        %1550 = vmatpush2.bf16.msra.mxu0 0
        %1551 = vmatprep.subr.bf16.mxu0 0
        %1552 = vmatpush2.bf16.msra.mxu0 0
        %1553 = vmatprep.subr.bf16.mxu0 0
        %1554 = vmatpush2.bf16.msra.mxu0 0
        %1555 = vmatprep.subr.bf16.mxu0 0
        %1556 = vmatpush2.bf16.msra.mxu0 0
        %1557 = vmatprep.mubr.bf16.mxu0 0
        %1558 = vmatmul.mubr.bf16.gmra.mxu0 %v1520
        %v1559 = vpop.f32.mrf.mxu0
        %v1560 = vadd.f32 0.0, %v1559
        %v1561 = vpop.f32.mrf.mxu0
        %v1562 = vpop.f32.mrf.mxu0
        %v1563 = vpop.f32.mrf.mxu0
        %1564 = vdwg.mxu0
        %v1566 = vsel %vm1197, %v1421, 0
        %v1569 = vsel %vm1429, %v1425, 0
        %1571 = vmatprep.subr.bf16.mxu0 0
        %1572 = vmatpush1.bf16.msra.mxu0 0
        %1573 = vmatprep.subr.bf16.mxu0 0
        %1574 = vmatpush1.bf16.msra.mxu0 0
        %1575 = vmatprep.subr.bf16.mxu0 0
        %1576 = vmatpush1.bf16.msra.mxu0 0
        %1577 = vmatprep.subr.bf16.mxu0 0
        %1578 = vmatpush1.bf16.msra.mxu0 0
        %1579 = vmatprep.subr.bf16.mxu0 0
        %1580 = vmatpush1.bf16.msra.mxu0 0
        %1581 = vmatprep.subr.bf16.mxu0 0
        %1582 = vmatpush1.bf16.msra.mxu0 0
        %1583 = vmatprep.subr.bf16.mxu0 0
        %1584 = vmatpush1.bf16.msra.mxu0 0
        %1585 = vmatprep.subr.bf16.mxu0 0
        %1586 = vmatpush1.bf16.msra.mxu0 %v1569
        %1587 = vmatprep.subr.bf16.mxu0 0
        %1588 = vmatpush2.bf16.msra.mxu0 0
        %1589 = vmatprep.subr.bf16.mxu0 0
        %1590 = vmatpush2.bf16.msra.mxu0 0
        %1591 = vmatprep.subr.bf16.mxu0 0
        %1592 = vmatpush2.bf16.msra.mxu0 0
        %1593 = vmatprep.subr.bf16.mxu0 0
        %1594 = vmatpush2.bf16.msra.mxu0 0
        %1595 = vmatprep.subr.bf16.mxu0 0
        %1596 = vmatpush2.bf16.msra.mxu0 0
        %1597 = vmatprep.subr.bf16.mxu0 0
        %1598 = vmatpush2.bf16.msra.mxu0 0
        %1599 = vmatprep.subr.bf16.mxu0 0
        %1600 = vmatpush2.bf16.msra.mxu0 0
        %1601 = vmatprep.subr.bf16.mxu0 0
        %1602 = vmatpush2.bf16.msra.mxu0 0
        %1603 = vmatprep.mubr.bf16.mxu0 0
        %1604 = vmatmul.mubr.bf16.gmra.mxu0 %v1566
        %v1605 = vpop.f32.mrf.mxu0
        %v1606 = vadd.f32 0.0, %v1605
        %v1607 = vpop.f32.mrf.mxu0
        %v1608 = vpop.f32.mrf.mxu0
        %v1609 = vpop.f32.mrf.mxu0
        %1610 = vdwg.mxu0
        %v1611 = vrcp.pop %v1408
        %v1612 = vrcp.pop %v1411
        %v1613 = vrcp.pop %v1414
        %v1614 = vrcp.pop %v1417
        %v1615 = vmul.f32 %v1468, %v1611
        %v1616 = vmul.f32 %v1514, %v1612
        %v1617 = vmul.f32 %v1560, %v1613
        %v1618 = vmul.f32 %v1606, %v1614
        %v1619 = vpack.c.bf16 %v1615, %v1615
        %v1620 = vpack.c.bf16 %v1616, %v1616
        %v1621 = vpack.c.bf16 %v1617, %v1617
        %v1622 = vpack.c.bf16 %v1618, %v1618
        %v1623 = vld [vmem:[%s9] sm:$0xf]
        %v1624 = vld [vmem:[%s9 + $0x4] sm:$0xf]
        %v1625 = vld [vmem:[%s9 + $0x8] sm:$0xf]
        %v1626 = vld [vmem:[%s9 + $0xc] sm:$0xf]
        %v1628 = vsel %vm1197, %v1619, 0
        %v1631 = vsel %vm1429, %v1623, 0
        %1633 = vmatprep.subr.bf16.mxu0 0
        %1634 = vmatpush1.bf16.msra.mxu0 0
        %1635 = vmatprep.subr.bf16.mxu0 0
        %1636 = vmatpush1.bf16.msra.mxu0 0
        %1637 = vmatprep.subr.bf16.mxu0 0
        %1638 = vmatpush1.bf16.msra.mxu0 0
        %1639 = vmatprep.subr.bf16.mxu0 0
        %1640 = vmatpush1.bf16.msra.mxu0 0
        %1641 = vmatprep.subr.bf16.mxu0 0
        %1642 = vmatpush1.bf16.msra.mxu0 0
        %1643 = vmatprep.subr.bf16.mxu0 0
        %1644 = vmatpush1.bf16.msra.mxu0 0
        %1645 = vmatprep.subr.bf16.mxu0 0
        %1646 = vmatpush1.bf16.msra.mxu0 0
        %1647 = vmatprep.subr.bf16.mxu0 0
        %1648 = vmatpush1.bf16.msra.mxu0 %v1631
        %1649 = vmatprep.subr.bf16.mxu0 0
        %1650 = vmatpush2.bf16.msra.mxu0 0
        %1651 = vmatprep.subr.bf16.mxu0 0
        %1652 = vmatpush2.bf16.msra.mxu0 0
        %1653 = vmatprep.subr.bf16.mxu0 0
        %1654 = vmatpush2.bf16.msra.mxu0 0
        %1655 = vmatprep.subr.bf16.mxu0 0
        %1656 = vmatpush2.bf16.msra.mxu0 0
        %1657 = vmatprep.subr.bf16.mxu0 0
        %1658 = vmatpush2.bf16.msra.mxu0 0
        %1659 = vmatprep.subr.bf16.mxu0 0
        %1660 = vmatpush2.bf16.msra.mxu0 0
        %1661 = vmatprep.subr.bf16.mxu0 0
        %1662 = vmatpush2.bf16.msra.mxu0 0
        %1663 = vmatprep.subr.bf16.mxu0 0
        %1664 = vmatpush2.bf16.msra.mxu0 0
        %1665 = vmatprep.mubr.bf16.mxu0 0
        %1666 = vmatmul.mubr.bf16.gmra.mxu0 %v1628
        %v1667 = vpop.f32.mrf.mxu0
        %v1668 = vadd.f32 0.0, %v1667
        %v1669 = vpop.f32.mrf.mxu0
        %v1670 = vpop.f32.mrf.mxu0
        %v1671 = vpop.f32.mrf.mxu0
        %1672 = vdwg.mxu0
        %v1674 = vsel %vm1197, %v1620, 0
        %v1677 = vsel %vm1429, %v1624, 0
        %1679 = vmatprep.subr.bf16.mxu0 0
        %1680 = vmatpush1.bf16.msra.mxu0 0
        %1681 = vmatprep.subr.bf16.mxu0 0
        %1682 = vmatpush1.bf16.msra.mxu0 0
        %1683 = vmatprep.subr.bf16.mxu0 0
        %1684 = vmatpush1.bf16.msra.mxu0 0
        %1685 = vmatprep.subr.bf16.mxu0 0
        %1686 = vmatpush1.bf16.msra.mxu0 0
        %1687 = vmatprep.subr.bf16.mxu0 0
        %1688 = vmatpush1.bf16.msra.mxu0 0
        %1689 = vmatprep.subr.bf16.mxu0 0
        %1690 = vmatpush1.bf16.msra.mxu0 0
        %1691 = vmatprep.subr.bf16.mxu0 0
        %1692 = vmatpush1.bf16.msra.mxu0 0
        %1693 = vmatprep.subr.bf16.mxu0 0
        %1694 = vmatpush1.bf16.msra.mxu0 %v1677
        %1695 = vmatprep.subr.bf16.mxu0 0
        %1696 = vmatpush2.bf16.msra.mxu0 0
        %1697 = vmatprep.subr.bf16.mxu0 0
        %1698 = vmatpush2.bf16.msra.mxu0 0
        %1699 = vmatprep.subr.bf16.mxu0 0
        %1700 = vmatpush2.bf16.msra.mxu0 0
        %1701 = vmatprep.subr.bf16.mxu0 0
        %1702 = vmatpush2.bf16.msra.mxu0 0
        %1703 = vmatprep.subr.bf16.mxu0 0
        %1704 = vmatpush2.bf16.msra.mxu0 0
        %1705 = vmatprep.subr.bf16.mxu0 0
        %1706 = vmatpush2.bf16.msra.mxu0 0
        %1707 = vmatprep.subr.bf16.mxu0 0
        %1708 = vmatpush2.bf16.msra.mxu0 0
        %1709 = vmatprep.subr.bf16.mxu0 0
        %1710 = vmatpush2.bf16.msra.mxu0 0
        %1711 = vmatprep.mubr.bf16.mxu0 0
        %1712 = vmatmul.mubr.bf16.gmra.mxu0 %v1674
        %v1713 = vpop.f32.mrf.mxu0
        %v1714 = vadd.f32 0.0, %v1713
        %v1715 = vpop.f32.mrf.mxu0
        %v1716 = vpop.f32.mrf.mxu0
        %v1717 = vpop.f32.mrf.mxu0
        %1718 = vdwg.mxu0
        %v1720 = vsel %vm1197, %v1621, 0
        %v1723 = vsel %vm1429, %v1625, 0
        %1725 = vmatprep.subr.bf16.mxu0 0
        %1726 = vmatpush1.bf16.msra.mxu0 0
        %1727 = vmatprep.subr.bf16.mxu0 0
        %1728 = vmatpush1.bf16.msra.mxu0 0
        %1729 = vmatprep.subr.bf16.mxu0 0
        %1730 = vmatpush1.bf16.msra.mxu0 0
        %1731 = vmatprep.subr.bf16.mxu0 0
        %1732 = vmatpush1.bf16.msra.mxu0 0
        %1733 = vmatprep.subr.bf16.mxu0 0
        %1734 = vmatpush1.bf16.msra.mxu0 0
        %1735 = vmatprep.subr.bf16.mxu0 0
        %1736 = vmatpush1.bf16.msra.mxu0 0
        %1737 = vmatprep.subr.bf16.mxu0 0
        %1738 = vmatpush1.bf16.msra.mxu0 0
        %1739 = vmatprep.subr.bf16.mxu0 0
        %1740 = vmatpush1.bf16.msra.mxu0 %v1723
        %1741 = vmatprep.subr.bf16.mxu0 0
        %1742 = vmatpush2.bf16.msra.mxu0 0
        %1743 = vmatprep.subr.bf16.mxu0 0
        %1744 = vmatpush2.bf16.msra.mxu0 0
        %1745 = vmatprep.subr.bf16.mxu0 0
        %1746 = vmatpush2.bf16.msra.mxu0 0
        %1747 = vmatprep.subr.bf16.mxu0 0
        %1748 = vmatpush2.bf16.msra.mxu0 0
        %1749 = vmatprep.subr.bf16.mxu0 0
        %1750 = vmatpush2.bf16.msra.mxu0 0
        %1751 = vmatprep.subr.bf16.mxu0 0
        %1752 = vmatpush2.bf16.msra.mxu0 0
        %1753 = vmatprep.subr.bf16.mxu0 0
        %1754 = vmatpush2.bf16.msra.mxu0 0
        %1755 = vmatprep.subr.bf16.mxu0 0
        %1756 = vmatpush2.bf16.msra.mxu0 0
        %1757 = vmatprep.mubr.bf16.mxu0 0
        %1758 = vmatmul.mubr.bf16.gmra.mxu0 %v1720
        %v1759 = vpop.f32.mrf.mxu0
        %v1760 = vadd.f32 0.0, %v1759
        %v1761 = vpop.f32.mrf.mxu0
        %v1762 = vpop.f32.mrf.mxu0
        %v1763 = vpop.f32.mrf.mxu0
        %1764 = vdwg.mxu0
        %v1766 = vsel %vm1197, %v1622, 0
        %v1769 = vsel %vm1429, %v1626, 0
        %1771 = vmatprep.subr.bf16.mxu0 0
        %1772 = vmatpush1.bf16.msra.mxu0 0
        %1773 = vmatprep.subr.bf16.mxu0 0
        %1774 = vmatpush1.bf16.msra.mxu0 0
        %1775 = vmatprep.subr.bf16.mxu0 0
        %1776 = vmatpush1.bf16.msra.mxu0 0
        %1777 = vmatprep.subr.bf16.mxu0 0
        %1778 = vmatpush1.bf16.msra.mxu0 0
        %1779 = vmatprep.subr.bf16.mxu0 0
        %1780 = vmatpush1.bf16.msra.mxu0 0
        %1781 = vmatprep.subr.bf16.mxu0 0
        %1782 = vmatpush1.bf16.msra.mxu0 0
        %1783 = vmatprep.subr.bf16.mxu0 0
        %1784 = vmatpush1.bf16.msra.mxu0 0
        %1785 = vmatprep.subr.bf16.mxu0 0
        %1786 = vmatpush1.bf16.msra.mxu0 %v1769
        %1787 = vmatprep.subr.bf16.mxu0 0
        %1788 = vmatpush2.bf16.msra.mxu0 0
        %1789 = vmatprep.subr.bf16.mxu0 0
        %1790 = vmatpush2.bf16.msra.mxu0 0
        %1791 = vmatprep.subr.bf16.mxu0 0
        %1792 = vmatpush2.bf16.msra.mxu0 0
        %1793 = vmatprep.subr.bf16.mxu0 0
        %1794 = vmatpush2.bf16.msra.mxu0 0
        %1795 = vmatprep.subr.bf16.mxu0 0
        %1796 = vmatpush2.bf16.msra.mxu0 0
        %1797 = vmatprep.subr.bf16.mxu0 0
        %1798 = vmatpush2.bf16.msra.mxu0 0
        %1799 = vmatprep.subr.bf16.mxu0 0
        %1800 = vmatpush2.bf16.msra.mxu0 0
        %1801 = vmatprep.subr.bf16.mxu0 0
        %1802 = vmatpush2.bf16.msra.mxu0 0
        %1803 = vmatprep.mubr.bf16.mxu0 0
        %1804 = vmatmul.mubr.bf16.gmra.mxu0 %v1766
        %v1805 = vpop.f32.mrf.mxu0
        %v1806 = vadd.f32 0.0, %v1805
        %v1807 = vpop.f32.mrf.mxu0
        %v1808 = vpop.f32.mrf.mxu0
        %v1809 = vpop.f32.mrf.mxu0
        %1810 = vdwg.mxu0
        %v1811 = vsel %vm479, %v1668, 0.0
        %v1812 = vsel %vm479, %v1714, 0.0
        %v1813 = vadd.f32 %v1811, %v1812
        %v1814 = vsel %vm479, %v1760, 0.0
        %v1815 = vadd.f32 %v1813, %v1814
        %v1816 = vsel %vm479, %v1806, 0.0
        %v1817 = vadd.f32 %v1815, %v1816
        %v1818 = vld [vmem:[%s10] sm:$0x1]
        %v1820 = vlaneseq
        %v1821 = vshrl.u32 %v1820, 7
        %v1822 = vsub.s32 0, %v1821
        %v1823 = vrot.slane %v1818, %v1822
        %v1825 = vadd.f32 %v1817, %v1823
        %1826 = vst.msk [vmem:[%s403] sm:$0xff] %vm479, %v1825
        %s1827 = sand.u32 %s279, 1
        %s1828 = scalar_lea.sflag [#allocation3], %s1827
        %s1829 = sand.u32 %s279, 1
        %s1830 = smul.addr %s1829, 8
        %s1831 = scalar_lea.vmem [#allocation2], %s1830
        // Predicated region
        $region65: #{tpu_custom_call.1} parent=63 // pred_check
          %p1832 = pneg %p289
        $region66: #{tpu_custom_call.1} parent=63 // pred_check_branch
          %1834 = sbr.rel (%p1832) target = $region68
        $region67: #{tpu_custom_call.1} parent=63 // pred_region
          %s1836 = ssub.s32 128, 128
          %1837 = vsyncadd %s1828, %s1836
          %s1838 = smul.addr %s25, 128
          %s1839 = scalar_lea.hbm %s11, %s1838
          %s1841 = sshll.u32 %s1831, 4
          %s1842 = int_to_ptr.vmem [resolvable:$true] %s1841
          %1844 = dma.vmem_to_hbm [thread:$0]  %s1842, 128, %s1839, %s1828
        $region68: #{tpu_custom_call.1} parent=63 // pred_fallthru
          _
      $region64: #{tpu_custom_call.1} parent=5 // pred_fallthru
        _
      %p1845 = scmp.le.s32.totalorder 2, %s20
      // Predicated region
      $region69: #{tpu_custom_call.1} parent=5 // pred_check
        %p1846 = pneg %p1845
      $region70: #{tpu_custom_call.1} parent=5 // pred_check_branch
        %1848 = sbr.rel (%p1846) target = $region72
      $region71: #{tpu_custom_call.1} parent=5 // pred_region
        %s1849 = ssub.s32 %s20, 2
        // Predicated region
        $region73: #{tpu_custom_call.1} parent=71 // pred_check
          %p1850 = pneg %p295
        $region74: #{tpu_custom_call.1} parent=71 // pred_check_branch
          %1852 = sbr.rel (%p1850) target = $region76
        $region75: #{tpu_custom_call.1} parent=71 // pred_region
          %s1853 = sand.u32 %s280, 1
          %s1854 = scalar_lea.sflag [#allocation3], %s1853
          %s1855 = sand.u32 %s280, 1
          %s1856 = smul.addr %s1855, 8
          %s1857 = scalar_lea.vmem [#allocation2], %s1856
          %1858 = dma.done %s1854, 128
        $region76: #{tpu_custom_call.1} parent=71 // pred_fallthru
          _
      $region72: #{tpu_custom_call.1} parent=5 // pred_fallthru
        _
    $region6: #{tpu_custom_call.1} parent=1 // loop_footer
      %s24 = sadd.s32 1, %s20
    $region7: #{tpu_custom_call.1} parent=1 // loop_footer_branch
      %19 = sbr.rel target = $region3
    $region8: #{tpu_custom_call.1} parent=1 // loop_exit
      _
    %1859 = vsyncpa [#allocation3], 1
    %s1860 = scalar_lea.sflag [#allocation3], 1
    %1861 = vsyncpa %s1860, 1

</llo_original>
